<compile_context>
chip_gen: v7x
topology: tpu7x:2x2x1
jax: 0.10.0
libtpu: 0.0.40
codegen_flags: <defaults>
</compile_context>

<pallas_src>
import math
from functools import partial

import jax
import jax.numpy as jnp
import numpy as np
from jax.experimental import pallas as pl
from jax.experimental.pallas import tpu as pltpu

NUM_HEADS = 4
LN_EPS = 1e-6  # MCAN LayerNorm: eps=1e-6, (x-mean)/(std+eps), unbiased std


def _layer_norm(y, g, b, feat_dim, approx_recip):
    mean = jnp.mean(y, axis=-1, keepdims=True)
    # torch.std defaults to the unbiased estimator (divide by H-1)
    var = jnp.sum((y - mean) ** 2, axis=-1, keepdims=True) * (1.0 / (feat_dim - 1))
    denom = jnp.sqrt(var) + LN_EPS
    if approx_recip:
        inv = pl.reciprocal(denom, approx=True)  # EUP slot, ~free
    else:
        inv = 1.0 / denom
    return g * (y - mean) * inv + b


def self_attn_kernel(approx_recip,
                     x_ref, mask_ref,
                     wqkv_ref, bqkv_ref, wm_ref, bm_ref,
                     w1_ref, b1_ref, w2_ref, b2_ref,
                     g1_ref, be1_ref, g2_ref, be2_ref,
                     out_ref):
    mm_dtype = wqkv_ref.dtype              # MXU operand dtype: bf16 or fp32
    NB, S = mask_ref.shape                 # batches in this block, seq length
    H = x_ref.shape[1]
    dh = H // NUM_HEADS

    x = x_ref[...]                         # (NB*S, H) fp32
    xm = x.astype(mm_dtype)

    # Additive mask rows, (NB, S); per-batch (1, S) slice broadcasts along
    # sublanes when added to (S, S) scores — no (S, S) bias materialized.
    # masked_fill(mask, -1e9) ~= scores + (-1e9 * mask) under the softmax.
    neg_mask = mask_ref[...] * jnp.float32(-1e9)

    # Fused QKV projection: one MXU issue, 3H = 96-lane output, fp32 accumulate.
    # 1/sqrt(dh) was folded into wq/bq at parameter-prep time.
    qkv = jnp.dot(xm, wqkv_ref[...],
                  preferred_element_type=jnp.float32) + bqkv_ref[...]
    qkv_m = qkv.astype(mm_dtype)           # one full-width cast, not per head

    # Attention per (batch, head); merge projection deferred to one matmul.
    pv_slabs = []
    for b in range(NB):
        rows = slice(b * S, (b + 1) * S)
        bias_b = neg_mask[b:b + 1, :]      # (1, S)
        head_slabs = []
        for h in range(NUM_HEADS):
            qh = qkv_m[rows, h * dh:(h + 1) * dh]
            kh = qkv_m[rows, H + h * dh:H + (h + 1) * dh]
            vh = qkv_m[rows, 2 * H + h * dh:2 * H + (h + 1) * dh]
            # q_h @ k_h^T without an explicit transpose of k_h
            scores = jax.lax.dot_general(
                qh, kh, (((1,), (1,)), ((), ())),
                preferred_element_type=jnp.float32) + bias_b
            m = jnp.max(scores, axis=-1, keepdims=True)
            p = jnp.exp(scores - m)
            denom = jnp.sum(p, axis=-1, keepdims=True)
            if approx_recip:
                p = p * pl.reciprocal(denom, approx=True)
            else:
                p = p / denom
            head_slabs.append(jnp.dot(p.astype(mm_dtype), vh,
                                      preferred_element_type=jnp.float32))
        # lane-concat (XLU slot) of the four (S, dh) slabs into (S, H)
        pv_slabs.append(jnp.concatenate(head_slabs, axis=1))
    pv = pv_slabs[0] if NB == 1 else jnp.concatenate(pv_slabs, axis=0)

    # Single merge matmul with the unsplit wm (1 MXU issue, not NUM_HEADS).
    atted = jnp.dot(pv.astype(mm_dtype), wm_ref[...],
                    preferred_element_type=jnp.float32) + bm_ref[...]

    # residual + LayerNorm 1
    x1 = _layer_norm(x + atted, g1_ref[...], be1_ref[...], H, approx_recip)

    # FFN: Linear -> ReLU -> Linear
    h1 = jnp.dot(x1.astype(mm_dtype), w1_ref[...],
                 preferred_element_type=jnp.float32) + b1_ref[...]
    h1 = jnp.maximum(h1, 0.0)
    ffn = jnp.dot(h1.astype(mm_dtype), w2_ref[...],
                  preferred_element_type=jnp.float32) + b2_ref[...]

    # residual + LayerNorm 2
    x2 = _layer_norm(x1 + ffn, g2_ref[...], be2_ref[...], H, approx_recip)
    out_ref[...] = x2.astype(out_ref.dtype)


def prepare_params(params, matmul_dtype=jnp.bfloat16):
    """One-time parameter prep: fuse QKV, fold 1/sqrt(dh), cast MXU weights.

    Call once outside the hot path; self_attn() then does no per-call casts."""
    H = params["wq"].shape[0]
    dh = H // NUM_HEADS
    scale = 1.0 / math.sqrt(dh)
    wqkv = jnp.concatenate(
        [params["wq"] * scale, params["wk"], params["wv"]], axis=1)   # (H, 3H)
    bqkv = jnp.concatenate(
        [params["bq"] * scale, params["bk"], params["bv"]], axis=1)   # (1, 3H)
    mm = lambda w: w.astype(matmul_dtype)
    return {
        "wqkv": mm(wqkv), "bqkv": bqkv,
        "wm": mm(params["wm"]), "bm": params["bm"],
        "w1": mm(params["w1"]), "b1": params["b1"],
        "w2": mm(params["w2"]), "b2": params["b2"],
        "g1": params["g1"], "be1": params["be1"],
        "g2": params["g2"], "be2": params["be2"],
    }


def _default_batches_per_block(B):
    """v7x (2 TC/chip): one batch per 'parallel' grid step so both cores work.
    Single-TC v5e/v6e: collapse the batch grid into one step (less fixed
    overhead, better sublane fill)."""
    try:
        kind = jax.devices()[0].device_kind.lower()
    except Exception:
        kind = ""
    if ("v7" in kind or "7x" in kind) and B >= 2:
        return 1
    return B


@partial(jax.jit, static_argnames=("batches_per_block", "approx_recip"))
def _self_attn_call(x, x_mask, pp, batches_per_block, approx_recip):
    B, S, H = x.shape
    NB = batches_per_block
    num_blocks = B // NB

    # Natural-layout blocks: (NB*S, H) activations, (NB, S) mask.  Block last
    # two dims equal the full array dims, so no (8,128) padding issue and no
    # in-kernel relayout (lane-dense reshape trick dropped per review).
    x_blk = x.reshape(num_blocks, NB * S, H)
    mask_blk = x_mask.astype(jnp.float32).reshape(num_blocks, NB, S)

    param_args = [pp["wqkv"], pp["bqkv"], pp["wm"], pp["bm"],
                  pp["w1"], pp["b1"], pp["w2"], pp["b2"],
                  pp["g1"], pp["be1"], pp["g2"], pp["be2"]]

    def resident(a):
        # Grid-invariant parameter: full-array block, constant index map.
        # TODO(synk): pipeline_mode=pl.Buffered(1) once weights are large
        # enough for double-buffering to matter (irrelevant at H=32).
        return pl.BlockSpec(a.shape, lambda b, _nd=a.ndim: (0,) * _nd)

    def batch_block(*rest):
        n = len(rest)
        return pl.BlockSpec((pl.Squeezed(),) + tuple(rest),
                            lambda b, _n=n: (b,) + (0,) * _n)

    out = pl.pallas_call(
        partial(self_attn_kernel, approx_recip),
        out_shape=jax.ShapeDtypeStruct((num_blocks, NB * S, H), jnp.float32),
        grid=(num_blocks,),
        in_specs=[batch_block(NB * S, H),        # x
                  batch_block(NB, S)]            # mask
                 + [resident(a) for a in param_args],
        out_specs=batch_block(NB * S, H),
        compiler_params=pltpu.CompilerParams(
            dimension_semantics=("parallel",),   # v7x: one block per TC
            vmem_limit_bytes=32 * 1024 * 1024,
        ),
    )(x_blk, mask_blk, *param_args)
    return out.reshape(B, S, H)


def self_attn(x, x_mask, prepared_params, *, batches_per_block=None,
              approx_recip=True):
    """x: (B, S, H) fp32, x_mask: (B, S) (1.0 = masked key).
    prepared_params: output of prepare_params() (hoisted casts/fusions)."""
    B = x.shape[0]
    NB = batches_per_block if batches_per_block is not None \
        else _default_batches_per_block(B)
    assert B % NB == 0, "batches_per_block must divide B"
    return _self_attn_call(x, x_mask, prepared_params, NB, approx_recip)


def reference(x, x_mask, p):
    """Pure-JAX reference mirroring the PyTorch forward (dropout = identity)."""
    B, S, H = x.shape
    nh, dh = NUM_HEADS, H // NUM_HEADS
    q = (x @ p["wq"] + p["bq"]).reshape(B, S, nh, dh).transpose(0, 2, 1, 3)
    k = (x @ p["wk"] + p["bk"]).reshape(B, S, nh, dh).transpose(0, 2, 1, 3)
    v = (x @ p["wv"] + p["bv"]).reshape(B, S, nh, dh).transpose(0, 2, 1, 3)
    scores = jnp.einsum("bhqd,bhkd->bhqk", q, k) / math.sqrt(dh)
    scores = jnp.where(x_mask[:, None, None, :] > 0.0, -1e9, scores)
    att = jax.nn.softmax(scores, axis=-1)
    atted = jnp.einsum("bhqk,bhkd->bhqd", att, v).transpose(0, 2, 1, 3).reshape(B, S, H)
    atted = atted @ p["wm"] + p["bm"]

    def ln(y, g, b):
        mean = y.mean(-1, keepdims=True)
        std = jnp.sqrt(((y - mean) ** 2).sum(-1, keepdims=True) / (H - 1))
        return g * (y - mean) / (std + LN_EPS) + b

    x1 = ln(x + atted, p["g1"], p["be1"])
    ffn = jnp.maximum(x1 @ p["w1"] + p["b1"], 0.0) @ p["w2"] + p["b2"]
    return ln(x1 + ffn, p["g2"], p["be2"])


def make_params(key, hidden, ff_dim):
    ks = jax.random.split(key, 8)
    s = 0.05
    return {
        "wq": jax.random.normal(ks[0], (hidden, hidden), jnp.float32) * s,
        "wk": jax.random.normal(ks[1], (hidden, hidden), jnp.float32) * s,
        "wv": jax.random.normal(ks[2], (hidden, hidden), jnp.float32) * s,
        "wm": jax.random.normal(ks[3], (hidden, hidden), jnp.float32) * s,
        "w1": jax.random.normal(ks[4], (hidden, ff_dim), jnp.float32) * s,
        "w2": jax.random.normal(ks[5], (ff_dim, hidden), jnp.float32) * s,
        "bq": jax.random.normal(ks[6], (1, hidden), jnp.float32) * s,
        "bk": jnp.zeros((1, hidden), jnp.float32),
        "bv": jnp.zeros((1, hidden), jnp.float32),
        "bm": jax.random.normal(ks[7], (1, hidden), jnp.float32) * s,
        "b1": jnp.zeros((1, ff_dim), jnp.float32),
        "b2": jnp.zeros((1, hidden), jnp.float32),
        "g1": jnp.ones((1, hidden), jnp.float32),
        "be1": jnp.zeros((1, hidden), jnp.float32),
        "g2": jnp.ones((1, hidden), jnp.float32),
        "be2": jnp.zeros((1, hidden), jnp.float32),
    }


if __name__ == "__main__":
    B, S, H = 2, 8, 32           # batch, seq, hidden_dim
    FF = 4 * H                   # ff_dim = 128
    key = jax.random.PRNGKey(0)
    kx, kp = jax.random.split(key)

    x = jax.random.normal(kx, (B, S, H), jnp.float32)
    # mask out the last two key positions of every sequence (padding)
    x_mask = jnp.zeros((B, S), jnp.float32).at[:, S - 2:].set(1.0)
    params = make_params(kp, H, FF)

    ref = reference(x, x_mask, params)

    # fp32 MXU path with exact reciprocals: tight check against the reference.
    pp_f32 = prepare_params(params, matmul_dtype=jnp.float32)
    out_f32 = jax.block_until_ready(
        self_attn(x, x_mask, pp_f32, approx_recip=False))
    np.testing.assert_allclose(np.asarray(out_f32), np.asarray(ref),
                               rtol=5e-3, atol=5e-3)

    # bf16 MXU path (default fast path on v6e/v7x), chip-default batch mapping.
    pp_bf16 = prepare_params(params, matmul_dtype=jnp.bfloat16)
    out_bf16 = jax.block_until_ready(self_attn(x, x_mask, pp_bf16))
    np.testing.assert_allclose(np.asarray(out_bf16), np.asarray(ref),
                               rtol=3e-2, atol=3e-2)

    # Also exercise both batch-grid mappings explicitly (v7x-style per-batch
    # parallel blocks, and v5e/v6e-style collapsed batch).
    out_per_batch = jax.block_until_ready(
        self_attn(x, x_mask, pp_bf16, batches_per_block=1))
    np.testing.assert_allclose(np.asarray(out_per_batch), np.asarray(ref),
                               rtol=3e-2, atol=3e-2)
    out_collapsed = jax.block_until_ready(
        self_attn(x, x_mask, pp_bf16, batches_per_block=B))
    np.testing.assert_allclose(np.asarray(out_collapsed), np.asarray(ref),
                               rtol=3e-2, atol=3e-2)

    print("KERNEL_OK")
</pallas_src>

<mosaic_0001>
module attributes {stable_mosaic.version = 11 : i64} {
  func.func @self_attn_kernel(%arg0: i32, %arg1: memref<1x16x32xf32, #tpu.memory_space<vmem>>, %arg2: memref<1x2x8xf32, #tpu.memory_space<vmem>>, %arg3: memref<32x96xf32, #tpu.memory_space<vmem>>, %arg4: memref<1x96xf32, #tpu.memory_space<vmem>>, %arg5: memref<32x32xf32, #tpu.memory_space<vmem>>, %arg6: memref<1x32xf32, #tpu.memory_space<vmem>>, %arg7: memref<32x128xf32, #tpu.memory_space<vmem>>, %arg8: memref<1x128xf32, #tpu.memory_space<vmem>>, %arg9: memref<128x32xf32, #tpu.memory_space<vmem>>, %arg10: memref<1x32xf32, #tpu.memory_space<vmem>>, %arg11: memref<1x32xf32, #tpu.memory_space<vmem>>, %arg12: memref<1x32xf32, #tpu.memory_space<vmem>>, %arg13: memref<1x32xf32, #tpu.memory_space<vmem>>, %arg14: memref<1x32xf32, #tpu.memory_space<vmem>>, %arg15: memref<1x16x32xf32, #tpu.memory_space<vmem>>) attributes {dimension_semantics = [#tpu.dimension_semantics<parallel>], iteration_bounds = array<i64: 1>, scalar_prefetch = 0 : i64, scratch_operands = 0 : i64, tpu.core_type = #tpu.core_type<tc>, window_params = [{transform_indices = @transform_0, window_bounds = array<i64: 1, 16, 32>}, {transform_indices = @transform_1, window_bounds = array<i64: 1, 2, 8>}, {pipeline_mode = #tpu.pipeline_mode<synchronous>, transform_indices = @transform_2, window_bounds = array<i64: 32, 96>}, {pipeline_mode = #tpu.pipeline_mode<synchronous>, transform_indices = @transform_3, window_bounds = array<i64: 1, 96>}, {pipeline_mode = #tpu.pipeline_mode<synchronous>, transform_indices = @transform_4, window_bounds = array<i64: 32, 32>}, {pipeline_mode = #tpu.pipeline_mode<synchronous>, transform_indices = @transform_5, window_bounds = array<i64: 1, 32>}, {pipeline_mode = #tpu.pipeline_mode<synchronous>, transform_indices = @transform_6, window_bounds = array<i64: 32, 128>}, {pipeline_mode = #tpu.pipeline_mode<synchronous>, transform_indices = @transform_7, window_bounds = array<i64: 1, 128>}, {pipeline_mode = #tpu.pipeline_mode<synchronous>, transform_indices = @transform_8, window_bounds = array<i64: 128, 32>}, {pipeline_mode = #tpu.pipeline_mode<synchronous>, transform_indices = @transform_9, window_bounds = array<i64: 1, 32>}, {pipeline_mode = #tpu.pipeline_mode<synchronous>, transform_indices = @transform_10, window_bounds = array<i64: 1, 32>}, {pipeline_mode = #tpu.pipeline_mode<synchronous>, transform_indices = @transform_11, window_bounds = array<i64: 1, 32>}, {pipeline_mode = #tpu.pipeline_mode<synchronous>, transform_indices = @transform_12, window_bounds = array<i64: 1, 32>}, {pipeline_mode = #tpu.pipeline_mode<synchronous>, transform_indices = @transform_13, window_bounds = array<i64: 1, 32>}, {transform_indices = @transform_14, window_bounds = array<i64: 1, 16, 32>}]} {
    %c0 = arith.constant 0 : index
    %c0_0 = arith.constant 0 : index
    %c0_1 = arith.constant 0 : index
    %0 = vector.load %arg1[%c0, %c0_0, %c0_1] : memref<1x16x32xf32, #tpu.memory_space<vmem>>, vector<1x16x32xf32>
    %1 = vector.shape_cast %0 : vector<1x16x32xf32> to vector<16x32xf32>
    %c0_2 = arith.constant 0 : index
    %c0_3 = arith.constant 0 : index
    %c0_4 = arith.constant 0 : index
    %2 = vector.load %arg2[%c0_2, %c0_3, %c0_4] : memref<1x2x8xf32, #tpu.memory_space<vmem>>, vector<1x2x8xf32>
    %3 = vector.shape_cast %2 : vector<1x2x8xf32> to vector<2x8xf32>
    %cst = arith.constant -1.000000e+09 : f32
    %4 = vector.broadcast %cst : f32 to vector<2x8xf32>
    %5 = arith.mulf %3, %4 : vector<2x8xf32>
    %c0_5 = arith.constant 0 : index
    %c0_6 = arith.constant 0 : index
    %6 = vector.load %arg3[%c0_5, %c0_6] : memref<32x96xf32, #tpu.memory_space<vmem>>, vector<32x96xf32>
    %cst_7 = arith.constant dense<0.000000e+00> : vector<16x96xf32>
    %7 = tpu.matmul %1, %6, %cst_7 {dimension_numbers = #tpu.dot_dimension_numbers<[1], [0], [0], [1], [0, 0, 1, 1], [], []>} : vector<16x32xf32>, vector<32x96xf32>, vector<16x96xf32> -> vector<16x96xf32>
    %c0_8 = arith.constant 0 : index
    %c0_9 = arith.constant 0 : index
    %8 = vector.load %arg4[%c0_8, %c0_9] : memref<1x96xf32, #tpu.memory_space<vmem>>, vector<1x96xf32>
    %9 = vector.broadcast %8 : vector<1x96xf32> to vector<16x96xf32>
    %10 = arith.addf %7, %9 : vector<16x96xf32>
    %11 = vector.extract_strided_slice %5 {offsets = [0, 0], sizes = [1, 8], strides = [1, 1]} : vector<2x8xf32> to vector<1x8xf32>
    %12 = vector.extract_strided_slice %10 {offsets = [0, 0], sizes = [8, 8], strides = [1, 1]} : vector<16x96xf32> to vector<8x8xf32>
    %13 = vector.extract_strided_slice %10 {offsets = [0, 32], sizes = [8, 8], strides = [1, 1]} : vector<16x96xf32> to vector<8x8xf32>
    %14 = vector.extract_strided_slice %10 {offsets = [0, 64], sizes = [8, 8], strides = [1, 1]} : vector<16x96xf32> to vector<8x8xf32>
    %cst_10 = arith.constant dense<0.000000e+00> : vector<8x8xf32>
    %15 = tpu.matmul %12, %13, %cst_10 {dimension_numbers = #tpu.dot_dimension_numbers<[1], [1], [0], [0], [0, 0, 1, 0], [], []>} : vector<8x8xf32>, vector<8x8xf32>, vector<8x8xf32> -> vector<8x8xf32>
    %16 = vector.broadcast %11 : vector<1x8xf32> to vector<8x8xf32>
    %17 = arith.addf %15, %16 : vector<8x8xf32>
    %cst_11 = arith.constant dense<0xFF800000> : vector<8xf32>
    %18 = vector.multi_reduction <maximumf>, %17, %cst_11 [1] : vector<8x8xf32> to vector<8xf32>
    %19 = vector.shape_cast %18 : vector<8xf32> to vector<8x1xf32>
    %20 = vector.broadcast %19 : vector<8x1xf32> to vector<8x8xf32>
    %21 = arith.subf %17, %20 : vector<8x8xf32>
    %22 = math.exp %21 : vector<8x8xf32>
    %cst_12 = arith.constant dense<0.000000e+00> : vector<8xf32>
    %23 = vector.multi_reduction <add>, %22, %cst_12 [1] : vector<8x8xf32> to vector<8xf32>
    %24 = vector.shape_cast %23 : vector<8xf32> to vector<8x1xf32>
    %25 = vector.broadcast %24 : vector<8x1xf32> to vector<8x8xf32>
    %26 = arith.divf %22, %25 : vector<8x8xf32>
    %cst_13 = arith.constant dense<0.000000e+00> : vector<8x8xf32>
    %27 = tpu.matmul %26, %14, %cst_13 {dimension_numbers = #tpu.dot_dimension_numbers<[1], [0], [0], [1], [0, 0, 1, 1], [], []>} : vector<8x8xf32>, vector<8x8xf32>, vector<8x8xf32> -> vector<8x8xf32>
    %28 = vector.extract_strided_slice %10 {offsets = [0, 8], sizes = [8, 8], strides = [1, 1]} : vector<16x96xf32> to vector<8x8xf32>
    %29 = vector.extract_strided_slice %10 {offsets = [0, 40], sizes = [8, 8], strides = [1, 1]} : vector<16x96xf32> to vector<8x8xf32>
    %30 = vector.extract_strided_slice %10 {offsets = [0, 72], sizes = [8, 8], strides = [1, 1]} : vector<16x96xf32> to vector<8x8xf32>
    %cst_14 = arith.constant dense<0.000000e+00> : vector<8x8xf32>
    %31 = tpu.matmul %28, %29, %cst_14 {dimension_numbers = #tpu.dot_dimension_numbers<[1], [1], [0], [0], [0, 0, 1, 0], [], []>} : vector<8x8xf32>, vector<8x8xf32>, vector<8x8xf32> -> vector<8x8xf32>
    %32 = vector.broadcast %11 : vector<1x8xf32> to vector<8x8xf32>
    %33 = arith.addf %31, %32 : vector<8x8xf32>
    %cst_15 = arith.constant dense<0xFF800000> : vector<8xf32>
    %34 = vector.multi_reduction <maximumf>, %33, %cst_15 [1] : vector<8x8xf32> to vector<8xf32>
    %35 = vector.shape_cast %34 : vector<8xf32> to vector<8x1xf32>
    %36 = vector.broadcast %35 : vector<8x1xf32> to vector<8x8xf32>
    %37 = arith.subf %33, %36 : vector<8x8xf32>
    %38 = math.exp %37 : vector<8x8xf32>
    %cst_16 = arith.constant dense<0.000000e+00> : vector<8xf32>
    %39 = vector.multi_reduction <add>, %38, %cst_16 [1] : vector<8x8xf32> to vector<8xf32>
    %40 = vector.shape_cast %39 : vector<8xf32> to vector<8x1xf32>
    %41 = vector.broadcast %40 : vector<8x1xf32> to vector<8x8xf32>
    %42 = arith.divf %38, %41 : vector<8x8xf32>
    %cst_17 = arith.constant dense<0.000000e+00> : vector<8x8xf32>
    %43 = tpu.matmul %42, %30, %cst_17 {dimension_numbers = #tpu.dot_dimension_numbers<[1], [0], [0], [1], [0, 0, 1, 1], [], []>} : vector<8x8xf32>, vector<8x8xf32>, vector<8x8xf32> -> vector<8x8xf32>
    %44 = vector.extract_strided_slice %10 {offsets = [0, 16], sizes = [8, 8], strides = [1, 1]} : vector<16x96xf32> to vector<8x8xf32>
    %45 = vector.extract_strided_slice %10 {offsets = [0, 48], sizes = [8, 8], strides = [1, 1]} : vector<16x96xf32> to vector<8x8xf32>
    %46 = vector.extract_strided_slice %10 {offsets = [0, 80], sizes = [8, 8], strides = [1, 1]} : vector<16x96xf32> to vector<8x8xf32>
    %cst_18 = arith.constant dense<0.000000e+00> : vector<8x8xf32>
    %47 = tpu.matmul %44, %45, %cst_18 {dimension_numbers = #tpu.dot_dimension_numbers<[1], [1], [0], [0], [0, 0, 1, 0], [], []>} : vector<8x8xf32>, vector<8x8xf32>, vector<8x8xf32> -> vector<8x8xf32>
    %48 = vector.broadcast %11 : vector<1x8xf32> to vector<8x8xf32>
    %49 = arith.addf %47, %48 : vector<8x8xf32>
    %cst_19 = arith.constant dense<0xFF800000> : vector<8xf32>
    %50 = vector.multi_reduction <maximumf>, %49, %cst_19 [1] : vector<8x8xf32> to vector<8xf32>
    %51 = vector.shape_cast %50 : vector<8xf32> to vector<8x1xf32>
    %52 = vector.broadcast %51 : vector<8x1xf32> to vector<8x8xf32>
    %53 = arith.subf %49, %52 : vector<8x8xf32>
    %54 = math.exp %53 : vector<8x8xf32>
    %cst_20 = arith.constant dense<0.000000e+00> : vector<8xf32>
    %55 = vector.multi_reduction <add>, %54, %cst_20 [1] : vector<8x8xf32> to vector<8xf32>
    %56 = vector.shape_cast %55 : vector<8xf32> to vector<8x1xf32>
    %57 = vector.broadcast %56 : vector<8x1xf32> to vector<8x8xf32>
    %58 = arith.divf %54, %57 : vector<8x8xf32>
    %cst_21 = arith.constant dense<0.000000e+00> : vector<8x8xf32>
    %59 = tpu.matmul %58, %46, %cst_21 {dimension_numbers = #tpu.dot_dimension_numbers<[1], [0], [0], [1], [0, 0, 1, 1], [], []>} : vector<8x8xf32>, vector<8x8xf32>, vector<8x8xf32> -> vector<8x8xf32>
    %60 = vector.extract_strided_slice %10 {offsets = [0, 24], sizes = [8, 8], strides = [1, 1]} : vector<16x96xf32> to vector<8x8xf32>
    %61 = vector.extract_strided_slice %10 {offsets = [0, 56], sizes = [8, 8], strides = [1, 1]} : vector<16x96xf32> to vector<8x8xf32>
    %62 = vector.extract_strided_slice %10 {offsets = [0, 88], sizes = [8, 8], strides = [1, 1]} : vector<16x96xf32> to vector<8x8xf32>
    %cst_22 = arith.constant dense<0.000000e+00> : vector<8x8xf32>
    %63 = tpu.matmul %60, %61, %cst_22 {dimension_numbers = #tpu.dot_dimension_numbers<[1], [1], [0], [0], [0, 0, 1, 0], [], []>} : vector<8x8xf32>, vector<8x8xf32>, vector<8x8xf32> -> vector<8x8xf32>
    %64 = vector.broadcast %11 : vector<1x8xf32> to vector<8x8xf32>
    %65 = arith.addf %63, %64 : vector<8x8xf32>
    %cst_23 = arith.constant dense<0xFF800000> : vector<8xf32>
    %66 = vector.multi_reduction <maximumf>, %65, %cst_23 [1] : vector<8x8xf32> to vector<8xf32>
    %67 = vector.shape_cast %66 : vector<8xf32> to vector<8x1xf32>
    %68 = vector.broadcast %67 : vector<8x1xf32> to vector<8x8xf32>
    %69 = arith.subf %65, %68 : vector<8x8xf32>
    %70 = math.exp %69 : vector<8x8xf32>
    %cst_24 = arith.constant dense<0.000000e+00> : vector<8xf32>
    %71 = vector.multi_reduction <add>, %70, %cst_24 [1] : vector<8x8xf32> to vector<8xf32>
    %72 = vector.shape_cast %71 : vector<8xf32> to vector<8x1xf32>
    %73 = vector.broadcast %72 : vector<8x1xf32> to vector<8x8xf32>
    %74 = arith.divf %70, %73 : vector<8x8xf32>
    %cst_25 = arith.constant dense<0.000000e+00> : vector<8x8xf32>
    %75 = tpu.matmul %74, %62, %cst_25 {dimension_numbers = #tpu.dot_dimension_numbers<[1], [0], [0], [1], [0, 0, 1, 1], [], []>} : vector<8x8xf32>, vector<8x8xf32>, vector<8x8xf32> -> vector<8x8xf32>
    %76 = tpu.concatenate %27, %43, %59, %75 in 1 : vector<8x8xf32>, vector<8x8xf32>, vector<8x8xf32>, vector<8x8xf32> -> vector<8x32xf32>
    %77 = vector.extract_strided_slice %5 {offsets = [1, 0], sizes = [1, 8], strides = [1, 1]} : vector<2x8xf32> to vector<1x8xf32>
    %78 = vector.extract_strided_slice %10 {offsets = [8, 0], sizes = [8, 8], strides = [1, 1]} : vector<16x96xf32> to vector<8x8xf32>
    %79 = vector.extract_strided_slice %10 {offsets = [8, 32], sizes = [8, 8], strides = [1, 1]} : vector<16x96xf32> to vector<8x8xf32>
    %80 = vector.extract_strided_slice %10 {offsets = [8, 64], sizes = [8, 8], strides = [1, 1]} : vector<16x96xf32> to vector<8x8xf32>
    %cst_26 = arith.constant dense<0.000000e+00> : vector<8x8xf32>
    %81 = tpu.matmul %78, %79, %cst_26 {dimension_numbers = #tpu.dot_dimension_numbers<[1], [1], [0], [0], [0, 0, 1, 0], [], []>} : vector<8x8xf32>, vector<8x8xf32>, vector<8x8xf32> -> vector<8x8xf32>
    %82 = vector.broadcast %77 : vector<1x8xf32> to vector<8x8xf32>
    %83 = arith.addf %81, %82 : vector<8x8xf32>
    %cst_27 = arith.constant dense<0xFF800000> : vector<8xf32>
    %84 = vector.multi_reduction <maximumf>, %83, %cst_27 [1] : vector<8x8xf32> to vector<8xf32>
    %85 = vector.shape_cast %84 : vector<8xf32> to vector<8x1xf32>
    %86 = vector.broadcast %85 : vector<8x1xf32> to vector<8x8xf32>
    %87 = arith.subf %83, %86 : vector<8x8xf32>
    %88 = math.exp %87 : vector<8x8xf32>
    %cst_28 = arith.constant dense<0.000000e+00> : vector<8xf32>
    %89 = vector.multi_reduction <add>, %88, %cst_28 [1] : vector<8x8xf32> to vector<8xf32>
    %90 = vector.shape_cast %89 : vector<8xf32> to vector<8x1xf32>
    %91 = vector.broadcast %90 : vector<8x1xf32> to vector<8x8xf32>
    %92 = arith.divf %88, %91 : vector<8x8xf32>
    %cst_29 = arith.constant dense<0.000000e+00> : vector<8x8xf32>
    %93 = tpu.matmul %92, %80, %cst_29 {dimension_numbers = #tpu.dot_dimension_numbers<[1], [0], [0], [1], [0, 0, 1, 1], [], []>} : vector<8x8xf32>, vector<8x8xf32>, vector<8x8xf32> -> vector<8x8xf32>
    %94 = vector.extract_strided_slice %10 {offsets = [8, 8], sizes = [8, 8], strides = [1, 1]} : vector<16x96xf32> to vector<8x8xf32>
    %95 = vector.extract_strided_slice %10 {offsets = [8, 40], sizes = [8, 8], strides = [1, 1]} : vector<16x96xf32> to vector<8x8xf32>
    %96 = vector.extract_strided_slice %10 {offsets = [8, 72], sizes = [8, 8], strides = [1, 1]} : vector<16x96xf32> to vector<8x8xf32>
    %cst_30 = arith.constant dense<0.000000e+00> : vector<8x8xf32>
    %97 = tpu.matmul %94, %95, %cst_30 {dimension_numbers = #tpu.dot_dimension_numbers<[1], [1], [0], [0], [0, 0, 1, 0], [], []>} : vector<8x8xf32>, vector<8x8xf32>, vector<8x8xf32> -> vector<8x8xf32>
    %98 = vector.broadcast %77 : vector<1x8xf32> to vector<8x8xf32>
    %99 = arith.addf %97, %98 : vector<8x8xf32>
    %cst_31 = arith.constant dense<0xFF800000> : vector<8xf32>
    %100 = vector.multi_reduction <maximumf>, %99, %cst_31 [1] : vector<8x8xf32> to vector<8xf32>
    %101 = vector.shape_cast %100 : vector<8xf32> to vector<8x1xf32>
    %102 = vector.broadcast %101 : vector<8x1xf32> to vector<8x8xf32>
    %103 = arith.subf %99, %102 : vector<8x8xf32>
    %104 = math.exp %103 : vector<8x8xf32>
    %cst_32 = arith.constant dense<0.000000e+00> : vector<8xf32>
    %105 = vector.multi_reduction <add>, %104, %cst_32 [1] : vector<8x8xf32> to vector<8xf32>
    %106 = vector.shape_cast %105 : vector<8xf32> to vector<8x1xf32>
    %107 = vector.broadcast %106 : vector<8x1xf32> to vector<8x8xf32>
    %108 = arith.divf %104, %107 : vector<8x8xf32>
    %cst_33 = arith.constant dense<0.000000e+00> : vector<8x8xf32>
    %109 = tpu.matmul %108, %96, %cst_33 {dimension_numbers = #tpu.dot_dimension_numbers<[1], [0], [0], [1], [0, 0, 1, 1], [], []>} : vector<8x8xf32>, vector<8x8xf32>, vector<8x8xf32> -> vector<8x8xf32>
    %110 = vector.extract_strided_slice %10 {offsets = [8, 16], sizes = [8, 8], strides = [1, 1]} : vector<16x96xf32> to vector<8x8xf32>
    %111 = vector.extract_strided_slice %10 {offsets = [8, 48], sizes = [8, 8], strides = [1, 1]} : vector<16x96xf32> to vector<8x8xf32>
    %112 = vector.extract_strided_slice %10 {offsets = [8, 80], sizes = [8, 8], strides = [1, 1]} : vector<16x96xf32> to vector<8x8xf32>
    %cst_34 = arith.constant dense<0.000000e+00> : vector<8x8xf32>
    %113 = tpu.matmul %110, %111, %cst_34 {dimension_numbers = #tpu.dot_dimension_numbers<[1], [1], [0], [0], [0, 0, 1, 0], [], []>} : vector<8x8xf32>, vector<8x8xf32>, vector<8x8xf32> -> vector<8x8xf32>
    %114 = vector.broadcast %77 : vector<1x8xf32> to vector<8x8xf32>
    %115 = arith.addf %113, %114 : vector<8x8xf32>
    %cst_35 = arith.constant dense<0xFF800000> : vector<8xf32>
    %116 = vector.multi_reduction <maximumf>, %115, %cst_35 [1] : vector<8x8xf32> to vector<8xf32>
    %117 = vector.shape_cast %116 : vector<8xf32> to vector<8x1xf32>
    %118 = vector.broadcast %117 : vector<8x1xf32> to vector<8x8xf32>
    %119 = arith.subf %115, %118 : vector<8x8xf32>
    %120 = math.exp %119 : vector<8x8xf32>
    %cst_36 = arith.constant dense<0.000000e+00> : vector<8xf32>
    %121 = vector.multi_reduction <add>, %120, %cst_36 [1] : vector<8x8xf32> to vector<8xf32>
    %122 = vector.shape_cast %121 : vector<8xf32> to vector<8x1xf32>
    %123 = vector.broadcast %122 : vector<8x1xf32> to vector<8x8xf32>
    %124 = arith.divf %120, %123 : vector<8x8xf32>
    %cst_37 = arith.constant dense<0.000000e+00> : vector<8x8xf32>
    %125 = tpu.matmul %124, %112, %cst_37 {dimension_numbers = #tpu.dot_dimension_numbers<[1], [0], [0], [1], [0, 0, 1, 1], [], []>} : vector<8x8xf32>, vector<8x8xf32>, vector<8x8xf32> -> vector<8x8xf32>
    %126 = vector.extract_strided_slice %10 {offsets = [8, 24], sizes = [8, 8], strides = [1, 1]} : vector<16x96xf32> to vector<8x8xf32>
    %127 = vector.extract_strided_slice %10 {offsets = [8, 56], sizes = [8, 8], strides = [1, 1]} : vector<16x96xf32> to vector<8x8xf32>
    %128 = vector.extract_strided_slice %10 {offsets = [8, 88], sizes = [8, 8], strides = [1, 1]} : vector<16x96xf32> to vector<8x8xf32>
    %cst_38 = arith.constant dense<0.000000e+00> : vector<8x8xf32>
    %129 = tpu.matmul %126, %127, %cst_38 {dimension_numbers = #tpu.dot_dimension_numbers<[1], [1], [0], [0], [0, 0, 1, 0], [], []>} : vector<8x8xf32>, vector<8x8xf32>, vector<8x8xf32> -> vector<8x8xf32>
    %130 = vector.broadcast %77 : vector<1x8xf32> to vector<8x8xf32>
    %131 = arith.addf %129, %130 : vector<8x8xf32>
    %cst_39 = arith.constant dense<0xFF800000> : vector<8xf32>
    %132 = vector.multi_reduction <maximumf>, %131, %cst_39 [1] : vector<8x8xf32> to vector<8xf32>
    %133 = vector.shape_cast %132 : vector<8xf32> to vector<8x1xf32>
    %134 = vector.broadcast %133 : vector<8x1xf32> to vector<8x8xf32>
    %135 = arith.subf %131, %134 : vector<8x8xf32>
    %136 = math.exp %135 : vector<8x8xf32>
    %cst_40 = arith.constant dense<0.000000e+00> : vector<8xf32>
    %137 = vector.multi_reduction <add>, %136, %cst_40 [1] : vector<8x8xf32> to vector<8xf32>
    %138 = vector.shape_cast %137 : vector<8xf32> to vector<8x1xf32>
    %139 = vector.broadcast %138 : vector<8x1xf32> to vector<8x8xf32>
    %140 = arith.divf %136, %139 : vector<8x8xf32>
    %cst_41 = arith.constant dense<0.000000e+00> : vector<8x8xf32>
    %141 = tpu.matmul %140, %128, %cst_41 {dimension_numbers = #tpu.dot_dimension_numbers<[1], [0], [0], [1], [0, 0, 1, 1], [], []>} : vector<8x8xf32>, vector<8x8xf32>, vector<8x8xf32> -> vector<8x8xf32>
    %142 = tpu.concatenate %93, %109, %125, %141 in 1 : vector<8x8xf32>, vector<8x8xf32>, vector<8x8xf32>, vector<8x8xf32> -> vector<8x32xf32>
    %143 = tpu.concatenate %76, %142 in 0 : vector<8x32xf32>, vector<8x32xf32> -> vector<16x32xf32>
    %c0_42 = arith.constant 0 : index
    %c0_43 = arith.constant 0 : index
    %144 = vector.load %arg5[%c0_42, %c0_43] : memref<32x32xf32, #tpu.memory_space<vmem>>, vector<32x32xf32>
    %cst_44 = arith.constant dense<0.000000e+00> : vector<16x32xf32>
    %145 = tpu.matmul %143, %144, %cst_44 {dimension_numbers = #tpu.dot_dimension_numbers<[1], [0], [0], [1], [0, 0, 1, 1], [], []>} : vector<16x32xf32>, vector<32x32xf32>, vector<16x32xf32> -> vector<16x32xf32>
    %c0_45 = arith.constant 0 : index
    %c0_46 = arith.constant 0 : index
    %146 = vector.load %arg6[%c0_45, %c0_46] : memref<1x32xf32, #tpu.memory_space<vmem>>, vector<1x32xf32>
    %147 = vector.broadcast %146 : vector<1x32xf32> to vector<16x32xf32>
    %148 = arith.addf %145, %147 : vector<16x32xf32>
    %149 = arith.addf %1, %148 : vector<16x32xf32>
    %c0_47 = arith.constant 0 : index
    %c0_48 = arith.constant 0 : index
    %150 = vector.load %arg11[%c0_47, %c0_48] : memref<1x32xf32, #tpu.memory_space<vmem>>, vector<1x32xf32>
    %c0_49 = arith.constant 0 : index
    %c0_50 = arith.constant 0 : index
    %151 = vector.load %arg12[%c0_49, %c0_50] : memref<1x32xf32, #tpu.memory_space<vmem>>, vector<1x32xf32>
    %cst_51 = arith.constant dense<0.000000e+00> : vector<16xf32>
    %152 = vector.multi_reduction <add>, %149, %cst_51 [1] : vector<16x32xf32> to vector<16xf32>
    %153 = vector.shape_cast %152 : vector<16xf32> to vector<16x1xf32>
    %cst_52 = arith.constant 3.200000e+01 : f32
    %154 = vector.broadcast %cst_52 : f32 to vector<16x1xf32>
    %155 = arith.divf %153, %154 : vector<16x1xf32>
    %156 = vector.broadcast %155 : vector<16x1xf32> to vector<16x32xf32>
    %157 = arith.subf %149, %156 : vector<16x32xf32>
    %158 = arith.mulf %157, %157 : vector<16x32xf32>
    %cst_53 = arith.constant dense<0.000000e+00> : vector<16xf32>
    %159 = vector.multi_reduction <add>, %158, %cst_53 [1] : vector<16x32xf32> to vector<16xf32>
    %160 = vector.shape_cast %159 : vector<16xf32> to vector<16x1xf32>
    %cst_54 = arith.constant 0.0322580636 : f32
    %161 = vector.broadcast %cst_54 : f32 to vector<16x1xf32>
    %162 = arith.mulf %160, %161 : vector<16x1xf32>
    %163 = math.sqrt %162 : vector<16x1xf32>
    %cst_55 = arith.constant 9.99999997E-7 : f32
    %164 = vector.broadcast %cst_55 : f32 to vector<16x1xf32>
    %165 = arith.addf %163, %164 : vector<16x1xf32>
    %cst_56 = arith.constant 1.000000e+00 : f32
    %166 = vector.broadcast %cst_56 : f32 to vector<16x1xf32>
    %167 = arith.divf %166, %165 : vector<16x1xf32>
    %168 = vector.broadcast %155 : vector<16x1xf32> to vector<16x32xf32>
    %169 = arith.subf %149, %168 : vector<16x32xf32>
    %170 = vector.broadcast %150 : vector<1x32xf32> to vector<16x32xf32>
    %171 = arith.mulf %170, %169 : vector<16x32xf32>
    %172 = vector.broadcast %167 : vector<16x1xf32> to vector<16x32xf32>
    %173 = arith.mulf %171, %172 : vector<16x32xf32>
    %174 = vector.broadcast %151 : vector<1x32xf32> to vector<16x32xf32>
    %175 = arith.addf %173, %174 : vector<16x32xf32>
    %c0_57 = arith.constant 0 : index
    %c0_58 = arith.constant 0 : index
    %176 = vector.load %arg7[%c0_57, %c0_58] : memref<32x128xf32, #tpu.memory_space<vmem>>, vector<32x128xf32>
    %cst_59 = arith.constant dense<0.000000e+00> : vector<16x128xf32>
    %177 = tpu.matmul %175, %176, %cst_59 {dimension_numbers = #tpu.dot_dimension_numbers<[1], [0], [0], [1], [0, 0, 1, 1], [], []>} : vector<16x32xf32>, vector<32x128xf32>, vector<16x128xf32> -> vector<16x128xf32>
    %c0_60 = arith.constant 0 : index
    %c0_61 = arith.constant 0 : index
    %178 = vector.load %arg8[%c0_60, %c0_61] : memref<1x128xf32, #tpu.memory_space<vmem>>, vector<1x128xf32>
    %179 = vector.broadcast %178 : vector<1x128xf32> to vector<16x128xf32>
    %180 = arith.addf %177, %179 : vector<16x128xf32>
    %cst_62 = arith.constant 0.000000e+00 : f32
    %181 = vector.broadcast %cst_62 : f32 to vector<16x128xf32>
    %182 = arith.maximumf %180, %181 : vector<16x128xf32>
    %c0_63 = arith.constant 0 : index
    %c0_64 = arith.constant 0 : index
    %183 = vector.load %arg9[%c0_63, %c0_64] : memref<128x32xf32, #tpu.memory_space<vmem>>, vector<128x32xf32>
    %cst_65 = arith.constant dense<0.000000e+00> : vector<16x32xf32>
    %184 = tpu.matmul %182, %183, %cst_65 {dimension_numbers = #tpu.dot_dimension_numbers<[1], [0], [0], [1], [0, 0, 1, 1], [], []>} : vector<16x128xf32>, vector<128x32xf32>, vector<16x32xf32> -> vector<16x32xf32>
    %c0_66 = arith.constant 0 : index
    %c0_67 = arith.constant 0 : index
    %185 = vector.load %arg10[%c0_66, %c0_67] : memref<1x32xf32, #tpu.memory_space<vmem>>, vector<1x32xf32>
    %186 = vector.broadcast %185 : vector<1x32xf32> to vector<16x32xf32>
    %187 = arith.addf %184, %186 : vector<16x32xf32>
    %188 = arith.addf %175, %187 : vector<16x32xf32>
    %c0_68 = arith.constant 0 : index
    %c0_69 = arith.constant 0 : index
    %189 = vector.load %arg13[%c0_68, %c0_69] : memref<1x32xf32, #tpu.memory_space<vmem>>, vector<1x32xf32>
    %c0_70 = arith.constant 0 : index
    %c0_71 = arith.constant 0 : index
    %190 = vector.load %arg14[%c0_70, %c0_71] : memref<1x32xf32, #tpu.memory_space<vmem>>, vector<1x32xf32>
    %cst_72 = arith.constant dense<0.000000e+00> : vector<16xf32>
    %191 = vector.multi_reduction <add>, %188, %cst_72 [1] : vector<16x32xf32> to vector<16xf32>
    %192 = vector.shape_cast %191 : vector<16xf32> to vector<16x1xf32>
    %cst_73 = arith.constant 3.200000e+01 : f32
    %193 = vector.broadcast %cst_73 : f32 to vector<16x1xf32>
    %194 = arith.divf %192, %193 : vector<16x1xf32>
    %195 = vector.broadcast %194 : vector<16x1xf32> to vector<16x32xf32>
    %196 = arith.subf %188, %195 : vector<16x32xf32>
    %197 = arith.mulf %196, %196 : vector<16x32xf32>
    %cst_74 = arith.constant dense<0.000000e+00> : vector<16xf32>
    %198 = vector.multi_reduction <add>, %197, %cst_74 [1] : vector<16x32xf32> to vector<16xf32>
    %199 = vector.shape_cast %198 : vector<16xf32> to vector<16x1xf32>
    %cst_75 = arith.constant 0.0322580636 : f32
    %200 = vector.broadcast %cst_75 : f32 to vector<16x1xf32>
    %201 = arith.mulf %199, %200 : vector<16x1xf32>
    %202 = math.sqrt %201 : vector<16x1xf32>
    %cst_76 = arith.constant 9.99999997E-7 : f32
    %203 = vector.broadcast %cst_76 : f32 to vector<16x1xf32>
    %204 = arith.addf %202, %203 : vector<16x1xf32>
    %cst_77 = arith.constant 1.000000e+00 : f32
    %205 = vector.broadcast %cst_77 : f32 to vector<16x1xf32>
    %206 = arith.divf %205, %204 : vector<16x1xf32>
    %207 = vector.broadcast %194 : vector<16x1xf32> to vector<16x32xf32>
    %208 = arith.subf %188, %207 : vector<16x32xf32>
    %209 = vector.broadcast %189 : vector<1x32xf32> to vector<16x32xf32>
    %210 = arith.mulf %209, %208 : vector<16x32xf32>
    %211 = vector.broadcast %206 : vector<16x1xf32> to vector<16x32xf32>
    %212 = arith.mulf %210, %211 : vector<16x32xf32>
    %213 = vector.broadcast %190 : vector<1x32xf32> to vector<16x32xf32>
    %214 = arith.addf %212, %213 : vector<16x32xf32>
    %c0_78 = arith.constant 0 : index
    %c0_79 = arith.constant 0 : index
    %c0_80 = arith.constant 0 : index
    %215 = vector.load %arg15[%c0_78, %c0_79, %c0_80] : memref<1x16x32xf32, #tpu.memory_space<vmem>>, vector<1x16x32xf32>
    %216 = vector.shape_cast %215 : vector<1x16x32xf32> to vector<16x32xf32>
    %217 = vector.shape_cast %214 : vector<16x32xf32> to vector<1x16x32xf32>
    tpu.vector_store %arg15[%c0_78, %c0_79, %c0_80], %217 {strides = array<i32>} : memref<1x16x32xf32, #tpu.memory_space<vmem>>, vector<1x16x32xf32>,
    return
  }
  func.func @transform_0(%arg0: i32) -> (i32, i32, i32) {
    %c0_i32 = arith.constant 0 : i32
    %c0_i32_0 = arith.constant 0 : i32
    %c0_i32_1 = arith.constant 0 : i32
    return %arg0, %c0_i32, %c0_i32_0 : i32, i32, i32
  }
  func.func @transform_1(%arg0: i32) -> (i32, i32, i32) {
    %c0_i32 = arith.constant 0 : i32
    %c0_i32_0 = arith.constant 0 : i32
    %c0_i32_1 = arith.constant 0 : i32
    return %arg0, %c0_i32, %c0_i32_0 : i32, i32, i32
  }
  func.func @transform_2(%arg0: i32) -> (i32, i32) {
    %c0_i32 = arith.constant 0 : i32
    %c0_i32_0 = arith.constant 0 : i32
    %c0_i32_1 = arith.constant 0 : i32
    return %c0_i32, %c0_i32_0 : i32, i32
  }
  func.func @transform_3(%arg0: i32) -> (i32, i32) {
    %c0_i32 = arith.constant 0 : i32
    %c0_i32_0 = arith.constant 0 : i32
    %c0_i32_1 = arith.constant 0 : i32
    return %c0_i32, %c0_i32_0 : i32, i32
  }
  func.func @transform_4(%arg0: i32) -> (i32, i32) {
    %c0_i32 = arith.constant 0 : i32
    %c0_i32_0 = arith.constant 0 : i32
    %c0_i32_1 = arith.constant 0 : i32
    return %c0_i32, %c0_i32_0 : i32, i32
  }
  func.func @transform_5(%arg0: i32) -> (i32, i32) {
    %c0_i32 = arith.constant 0 : i32
    %c0_i32_0 = arith.constant 0 : i32
    %c0_i32_1 = arith.constant 0 : i32
    return %c0_i32, %c0_i32_0 : i32, i32
  }
  func.func @transform_6(%arg0: i32) -> (i32, i32) {
    %c0_i32 = arith.constant 0 : i32
    %c0_i32_0 = arith.constant 0 : i32
    %c0_i32_1 = arith.constant 0 : i32
    return %c0_i32, %c0_i32_0 : i32, i32
  }
  func.func @transform_7(%arg0: i32) -> (i32, i32) {
    %c0_i32 = arith.constant 0 : i32
    %c0_i32_0 = arith.constant 0 : i32
    %c0_i32_1 = arith.constant 0 : i32
    return %c0_i32, %c0_i32_0 : i32, i32
  }
  func.func @transform_8(%arg0: i32) -> (i32, i32) {
    %c0_i32 = arith.constant 0 : i32
    %c0_i32_0 = arith.constant 0 : i32
    %c0_i32_1 = arith.constant 0 : i32
    return %c0_i32, %c0_i32_0 : i32, i32
  }
  func.func @transform_9(%arg0: i32) -> (i32, i32) {
    %c0_i32 = arith.constant 0 : i32
    %c0_i32_0 = arith.constant 0 : i32
    %c0_i32_1 = arith.constant 0 : i32
    return %c0_i32, %c0_i32_0 : i32, i32
  }
  func.func @transform_10(%arg0: i32) -> (i32, i32) {
    %c0_i32 = arith.constant 0 : i32
    %c0_i32_0 = arith.constant 0 : i32
    %c0_i32_1 = arith.constant 0 : i32
    return %c0_i32, %c0_i32_0 : i32, i32
  }
  func.func @transform_11(%arg0: i32) -> (i32, i32) {
    %c0_i32 = arith.constant 0 : i32
    %c0_i32_0 = arith.constant 0 : i32
    %c0_i32_1 = arith.constant 0 : i32
    return %c0_i32, %c0_i32_0 : i32, i32
  }
  func.func @transform_12(%arg0: i32) -> (i32, i32) {
    %c0_i32 = arith.constant 0 : i32
    %c0_i32_0 = arith.constant 0 : i32
    %c0_i32_1 = arith.constant 0 : i32
    return %c0_i32, %c0_i32_0 : i32, i32
  }
  func.func @transform_13(%arg0: i32) -> (i32, i32) {
    %c0_i32 = arith.constant 0 : i32
    %c0_i32_0 = arith.constant 0 : i32
    %c0_i32_1 = arith.constant 0 : i32
    return %c0_i32, %c0_i32_0 : i32, i32
  }
  func.func @transform_14(%arg0: i32) -> (i32, i32, i32) {
    %c0_i32 = arith.constant 0 : i32
    %c0_i32_0 = arith.constant 0 : i32
    %c0_i32_1 = arith.constant 0 : i32
    return %arg0, %c0_i32, %c0_i32_0 : i32, i32, i32
  }
}

</mosaic_0001>

<llo_original>
// kernel: _self_attn_call.1
$region0: #{_self_attn_call.1}
  #allocation0 [shape = 'u32[]', space=smem, size = 0x4, offset = 0x4, fixed_abs, tag = 'smem constant byte address 0x4 - core index']
  #allocation1 [shape = 'u32[144,128]{1,0:T(1,128)}', space=vmem, size = 0x12000, scoped, tag = 'internal scratch']
  %s0 = inlined_call_operand.vmem [shape: f32[1,16,32], index: 0, kind: input, shape index: {}]
  %s1 = inlined_call_operand.vmem [shape: f32[1,2,8], index: 1, kind: input, shape index: {}]
  %s2 = inlined_call_operand.vmem [shape: f32[32,96], index: 2, kind: input, shape index: {}]
  %s3 = inlined_call_operand.vmem [shape: f32[1,96], index: 3, kind: input, shape index: {}]
  %s4 = inlined_call_operand.vmem [shape: f32[32,32], index: 4, kind: input, shape index: {}]
  %s5 = inlined_call_operand.vmem [shape: f32[1,32], index: 5, kind: input, shape index: {}]
  %s6 = inlined_call_operand.vmem [shape: f32[32,128], index: 6, kind: input, shape index: {}]
  %s7 = inlined_call_operand.vmem [shape: f32[1,128], index: 7, kind: input, shape index: {}]
  %s8 = inlined_call_operand.vmem [shape: f32[128,32], index: 8, kind: input, shape index: {}]
  %s9 = inlined_call_operand.vmem [shape: f32[1,32], index: 9, kind: input, shape index: {}]
  %s10 = inlined_call_operand.vmem [shape: f32[1,32], index: 10, kind: input, shape index: {}]
  %s11 = inlined_call_operand.vmem [shape: f32[1,32], index: 11, kind: input, shape index: {}]
  %s12 = inlined_call_operand.vmem [shape: f32[1,32], index: 12, kind: input, shape index: {}]
  %s13 = inlined_call_operand.vmem [shape: f32[1,32], index: 13, kind: input, shape index: {}]
  %s14 = inlined_call_operand.hbm [shape: f32[1,16,32], index: 14, kind: output, shape index: {}]
  %s15 = sld [smem:[#allocation0]]
  $region66: #{_self_attn_call.1} parent=0
    _
  %s17 = ssub.s32 1, %s15
  %s18 = scalar_select 0, %s17, %s15
  $region1: #{_self_attn_call.1} parent=0
    #allocation2 [shape = 'u8[8192]{0}', space=vmem, size = 0x2000, scoped, tag = 'output window, operand 0, single buffered']
    #allocation3 [shape = 's32[1]{0}', space=sflag, size = 0x4, scoped, tag = 'scoped memory for _self_attn_call.1']
    %19 = vsyncpa [#allocation3], 0
    // Predicated region
    $region2: #{_self_attn_call.1} parent=1 // pred_check
      _
    $region3: #{_self_attn_call.1} parent=1 // pred_check_branch
      %21 = sbr.rel (0) target = $region5
    $region4: #{_self_attn_call.1} parent=1 // pred_region
      _
    $region5: #{_self_attn_call.1} parent=1 // pred_fallthru
      _
    // Predicated region
    $region6: #{_self_attn_call.1} parent=1 // pred_check
      _
    $region7: #{_self_attn_call.1} parent=1 // pred_check_branch
      %23 = sbr.rel (0) target = $region9
    $region8: #{_self_attn_call.1} parent=1 // pred_region
      _
    $region9: #{_self_attn_call.1} parent=1 // pred_fallthru
      _
    // Predicated region
    $region10: #{_self_attn_call.1} parent=1 // pred_check
      _
    $region11: #{_self_attn_call.1} parent=1 // pred_check_branch
      %25 = sbr.rel (0) target = $region13
    $region12: #{_self_attn_call.1} parent=1 // pred_region
      _
    $region13: #{_self_attn_call.1} parent=1 // pred_fallthru
      _
    // Predicated region
    $region14: #{_self_attn_call.1} parent=1 // pred_check
      _
    $region15: #{_self_attn_call.1} parent=1 // pred_check_branch
      %27 = sbr.rel (0) target = $region17
    $region16: #{_self_attn_call.1} parent=1 // pred_region
      _
    $region17: #{_self_attn_call.1} parent=1 // pred_fallthru
      _
    // Predicated region
    $region18: #{_self_attn_call.1} parent=1 // pred_check
      _
    $region19: #{_self_attn_call.1} parent=1 // pred_check_branch
      %29 = sbr.rel (0) target = $region21
    $region20: #{_self_attn_call.1} parent=1 // pred_region
      _
    $region21: #{_self_attn_call.1} parent=1 // pred_fallthru
      _
    // Predicated region
    $region22: #{_self_attn_call.1} parent=1 // pred_check
      _
    $region23: #{_self_attn_call.1} parent=1 // pred_check_branch
      %31 = sbr.rel (0) target = $region25
    $region24: #{_self_attn_call.1} parent=1 // pred_region
      _
    $region25: #{_self_attn_call.1} parent=1 // pred_fallthru
      _
    // Predicated region
    $region26: #{_self_attn_call.1} parent=1 // pred_check
      _
    $region27: #{_self_attn_call.1} parent=1 // pred_check_branch
      %33 = sbr.rel (0) target = $region29
    $region28: #{_self_attn_call.1} parent=1 // pred_region
      _
    $region29: #{_self_attn_call.1} parent=1 // pred_fallthru
      _
    // Predicated region
    $region30: #{_self_attn_call.1} parent=1 // pred_check
      _
    $region31: #{_self_attn_call.1} parent=1 // pred_check_branch
      %35 = sbr.rel (0) target = $region33
    $region32: #{_self_attn_call.1} parent=1 // pred_region
      _
    $region33: #{_self_attn_call.1} parent=1 // pred_fallthru
      _
    // Predicated region
    $region34: #{_self_attn_call.1} parent=1 // pred_check
      _
    $region35: #{_self_attn_call.1} parent=1 // pred_check_branch
      %37 = sbr.rel (0) target = $region37
    $region36: #{_self_attn_call.1} parent=1 // pred_region
      _
    $region37: #{_self_attn_call.1} parent=1 // pred_fallthru
      _
    // Predicated region
    $region38: #{_self_attn_call.1} parent=1 // pred_check
      _
    $region39: #{_self_attn_call.1} parent=1 // pred_check_branch
      %39 = sbr.rel (0) target = $region41
    $region40: #{_self_attn_call.1} parent=1 // pred_region
      _
    $region41: #{_self_attn_call.1} parent=1 // pred_fallthru
      _
    // Predicated region
    $region42: #{_self_attn_call.1} parent=1 // pred_check
      _
    $region43: #{_self_attn_call.1} parent=1 // pred_check_branch
      %41 = sbr.rel (0) target = $region45
    $region44: #{_self_attn_call.1} parent=1 // pred_region
      _
    $region45: #{_self_attn_call.1} parent=1 // pred_fallthru
      _
    // Predicated region
    $region46: #{_self_attn_call.1} parent=1 // pred_check
      _
    $region47: #{_self_attn_call.1} parent=1 // pred_check_branch
      %43 = sbr.rel (0) target = $region49
    $region48: #{_self_attn_call.1} parent=1 // pred_region
      _
    $region49: #{_self_attn_call.1} parent=1 // pred_fallthru
      _
    // Predicated region
    $region50: #{_self_attn_call.1} parent=1 // pred_check
      _
    $region51: #{_self_attn_call.1} parent=1 // pred_check_branch
      %45 = sbr.rel (0) target = $region53
    $region52: #{_self_attn_call.1} parent=1 // pred_region
      _
    $region53: #{_self_attn_call.1} parent=1 // pred_fallthru
      _
    // Predicated region
    $region54: #{_self_attn_call.1} parent=1 // pred_check
      _
    $region55: #{_self_attn_call.1} parent=1 // pred_check_branch
      %47 = sbr.rel (0) target = $region57
    $region56: #{_self_attn_call.1} parent=1 // pred_region
      _
    $region57: #{_self_attn_call.1} parent=1 // pred_fallthru
      _
    %v48 = vld [vmem:[%s0] sm:$0xff]
    %v49 = vld [vmem:[%s0 + $0x8] sm:$0xff]
    %v50 = vld [vmem:[%s1] sm:$0x3]
    %v51 = vmul.f32 %v50, -1e+09
    %v52 = vld [vmem:[%s2] sm:$0xff]
    %v53 = vld [vmem:[%s2 + $0x8] sm:$0xff]
    %v54 = vld [vmem:[%s2 + $0x10] sm:$0xff]
    %v55 = vld [vmem:[%s2 + $0x18] sm:$0xff]
    %v56 = vld [vmem:[%s3] sm:$0x1]
    %v58 = vlaneseq
    %v59 = vshrl.u32 %v58, 7
    %v60 = vsub.s32 0, %v59
    %v61 = vrot.slane %v56, %v60
    %vm63 = vcmask 261120
    %v65 = vsel %vm63, %v48, 0
    %v68 = vsel %vm63, %v49, 0
    %70 = vmatprep.subr.mxu0 0.0
    %71 = vmatpush1.msra.mxu0 %v52
    %72 = vmatprep.subr.mxu0 0.0
    %73 = vmatpush1.msra.mxu0 %v53
    %74 = vmatprep.subr.mxu0 0.0
    %75 = vmatpush1.msra.mxu0 %v54
    %76 = vmatprep.subr.mxu0 0.0
    %77 = vmatpush1.msra.mxu0 %v55
    %78 = vmatprep.subr.mxu0 0.0
    %79 = vmatpush1.msra.mxu0 0.0
    %80 = vmatprep.subr.mxu0 0.0
    %81 = vmatpush1.msra.mxu0 0.0
    %82 = vmatprep.subr.mxu0 0.0
    %83 = vmatpush1.msra.mxu0 0.0
    %84 = vmatprep.subr.mxu0 0.0
    %85 = vmatpush1.msra.mxu0 0.0
    %86 = vmatprep.subr.mxu0 0.0
    %87 = vmatpush1.msra.mxu0 0.0
    %88 = vmatprep.subr.mxu0 0.0
    %89 = vmatpush1.msra.mxu0 0.0
    %90 = vmatprep.subr.mxu0 0.0
    %91 = vmatpush1.msra.mxu0 0.0
    %92 = vmatprep.subr.mxu0 0.0
    %93 = vmatpush1.msra.mxu0 0.0
    %94 = vmatprep.subr.mxu0 0.0
    %95 = vmatpush1.msra.mxu0 0.0
    %96 = vmatprep.subr.mxu0 0.0
    %97 = vmatpush1.msra.mxu0 0.0
    %98 = vmatprep.subr.mxu0 0.0
    %99 = vmatpush1.msra.mxu0 0.0
    %100 = vmatprep.subr.mxu0 0.0
    %101 = vmatpush1.msra.mxu0 0.0
    %102 = vmatprep.subr.mxu0 0.0
    %103 = vmatpush1.msra.mxu0 0.0
    %104 = vmatprep.subr.mxu0 0.0
    %105 = vmatpush1.msra.mxu0 0.0
    %106 = vmatprep.subr.mxu0 0.0
    %107 = vmatpush1.msra.mxu0 0.0
    %108 = vmatprep.subr.mxu0 0.0
    %109 = vmatpush1.msra.mxu0 0.0
    %110 = vmatprep.subr.mxu0 0.0
    %111 = vmatpush1.msra.mxu0 0.0
    %112 = vmatprep.subr.mxu0 0.0
    %113 = vmatpush1.msra.mxu0 0.0
    %114 = vmatprep.subr.mxu0 0.0
    %115 = vmatpush1.msra.mxu0 0.0
    %116 = vmatprep.subr.mxu0 0.0
    %117 = vmatpush1.msra.mxu0 0.0
    %118 = vmatprep.subr.mxu0 0.0
    %119 = vmatpush1.msra.mxu0 0.0
    %120 = vmatprep.subr.mxu0 0.0
    %121 = vmatpush1.msra.mxu0 0.0
    %122 = vmatprep.subr.mxu0 0.0
    %123 = vmatpush1.msra.mxu0 0.0
    %124 = vmatprep.subr.mxu0 0.0
    %125 = vmatpush1.msra.mxu0 0.0
    %126 = vmatprep.subr.mxu0 0.0
    %127 = vmatpush1.msra.mxu0 0.0
    %128 = vmatprep.subr.mxu0 0.0
    %129 = vmatpush1.msra.mxu0 0.0
    %130 = vmatprep.subr.mxu0 0.0
    %131 = vmatpush1.msra.mxu0 0.0
    %132 = vmatprep.subr.mxu0 0.0
    %133 = vmatpush1.msra.mxu0 0.0
    %134 = vmatprep.mubr.f32.mxu0 0.0
    %135 = vmatmul.mubr.f32.gmra.mrb[0].mxu0 %v65
    %v136 = vpop.f32.mrb[0].mxu0
    %v137 = vadd.f32 %v61, %v136
    %v138 = vpop.f32.mrb[0].mxu0
    %139 = vmatprep.mubr.f32.mxu0 0.0
    %140 = vmatmul.mubr.f32.gmra.mrb[0].mxu0 %v68
    %v141 = vpop.f32.mrb[0].mxu0
    %v142 = vadd.f32 %v61, %v141
    %v143 = vpop.f32.mrb[0].mxu0
    %144 = vdwg.mxu0
    %v145 = vlaneseq
    %v146 = vshrl.u32 %v145, 7
    %v147 = vsub.s32 0, %v146
    %v148 = vrot.slane %v51, %v147
    %150 = vrot.lane.b32.xlu0 %v137, 96
    %v151 = vpop.permute.xlu0 %150
    %vm152 = vcmask 64512
    %v153 = vsel %vm152, %v137, 0
    %v155 = vsel %vm152, %v151, 0
    %157 = vmatprep.subr.mxu0 0.0
    %158 = vmatpush1.xpose.msra.mxu0 %v155
    %159 = vmatprep.subr.mxu0 0.0
    %160 = vmatpush1.xpose.msra.mxu0 0.0
    %161 = vmatprep.subr.mxu0 0.0
    %162 = vmatpush1.xpose.msra.mxu0 0.0
    %163 = vmatprep.subr.mxu0 0.0
    %164 = vmatpush1.xpose.msra.mxu0 0.0
    %165 = vmatprep.subr.mxu0 0.0
    %166 = vmatpush1.xpose.msra.mxu0 0.0
    %167 = vmatprep.subr.mxu0 0.0
    %168 = vmatpush1.xpose.msra.mxu0 0.0
    %169 = vmatprep.subr.mxu0 0.0
    %170 = vmatpush1.xpose.msra.mxu0 0.0
    %171 = vmatprep.subr.mxu0 0.0
    %172 = vmatpush1.xpose.msra.mxu0 0.0
    %173 = vmatprep.subr.mxu0 0.0
    %174 = vmatpush1.xpose.msra.mxu0 0.0
    %175 = vmatprep.subr.mxu0 0.0
    %176 = vmatpush1.xpose.msra.mxu0 0.0
    %177 = vmatprep.subr.mxu0 0.0
    %178 = vmatpush1.xpose.msra.mxu0 0.0
    %179 = vmatprep.subr.mxu0 0.0
    %180 = vmatpush1.xpose.msra.mxu0 0.0
    %181 = vmatprep.subr.mxu0 0.0
    %182 = vmatpush1.xpose.msra.mxu0 0.0
    %183 = vmatprep.subr.mxu0 0.0
    %184 = vmatpush1.xpose.msra.mxu0 0.0
    %185 = vmatprep.subr.mxu0 0.0
    %186 = vmatpush1.xpose.msra.mxu0 0.0
    %187 = vmatprep.subr.mxu0 0.0
    %188 = vmatpush1.xpose.msra.mxu0 0.0
    %189 = vmatprep.subr.mxu0 0.0
    %190 = vmatpush1.xpose.msra.mxu0 0.0
    %191 = vmatprep.subr.mxu0 0.0
    %192 = vmatpush1.xpose.msra.mxu0 0.0
    %193 = vmatprep.subr.mxu0 0.0
    %194 = vmatpush1.xpose.msra.mxu0 0.0
    %195 = vmatprep.subr.mxu0 0.0
    %196 = vmatpush1.xpose.msra.mxu0 0.0
    %197 = vmatprep.subr.mxu0 0.0
    %198 = vmatpush1.xpose.msra.mxu0 0.0
    %199 = vmatprep.subr.mxu0 0.0
    %200 = vmatpush1.xpose.msra.mxu0 0.0
    %201 = vmatprep.subr.mxu0 0.0
    %202 = vmatpush1.xpose.msra.mxu0 0.0
    %203 = vmatprep.subr.mxu0 0.0
    %204 = vmatpush1.xpose.msra.mxu0 0.0
    %205 = vmatprep.subr.mxu0 0.0
    %206 = vmatpush1.xpose.msra.mxu0 0.0
    %207 = vmatprep.subr.mxu0 0.0
    %208 = vmatpush1.xpose.msra.mxu0 0.0
    %209 = vmatprep.subr.mxu0 0.0
    %210 = vmatpush1.xpose.msra.mxu0 0.0
    %211 = vmatprep.subr.mxu0 0.0
    %212 = vmatpush1.xpose.msra.mxu0 0.0
    %213 = vmatprep.subr.mxu0 0.0
    %214 = vmatpush1.xpose.msra.mxu0 0.0
    %215 = vmatprep.subr.mxu0 0.0
    %216 = vmatpush1.xpose.msra.mxu0 0.0
    %217 = vmatprep.subr.mxu0 0.0
    %218 = vmatpush1.xpose.msra.mxu0 0.0
    %219 = vmatprep.subr.mxu0 0.0
    %220 = vmatpush1.xpose.msra.mxu0 0.0
    %221 = vmatprep.mubr.f32.mxu0 0.0
    %222 = vmatmul.mubr.f32.gmra.mrb[0].mxu0 %v153
    %v223 = vpop.f32.mrb[0].mxu0
    %v224 = vadd.f32 %v148, %v223
    %v225 = vpop.f32.mrb[0].mxu0
    %226 = vdwg.mxu0
    %v227 = vsel %vm152, %v224, -inf
    %228 = vmax.xlane.f32.xlu0 %v227
    %v229 = vpop.xlane.xlu0 %228
    %v230 = vsub.f32 %v224, %v229
    %v231 = vmul.f32 %v230, 1.442695
    %v232 = vpow.pop %v231
    %v233 = vsel %vm152, %v232, 0.0
    %234 = vadd.xlane.f32.xlu0 %v233
    %v235 = vpop.xlane.xlu0 %234
    %v236 = vrcp.pop %v235
    %v237 = vmul.f32 %v232, %v236
    %238 = vrot.lane.b32.xlu0 %v137, 64
    %v239 = vpop.permute.xlu0 %238
    %v242 = vsel %vm152, %v237, 0
    %244 = vmatprep.subr.mxu0 0.0
    %245 = vmatpush1.msra.mxu0 %v239
    %246 = vmatprep.subr.mxu0 0.0
    %247 = vmatpush1.msra.mxu0 0.0
    %248 = vmatprep.subr.mxu0 0.0
    %249 = vmatpush1.msra.mxu0 0.0
    %250 = vmatprep.subr.mxu0 0.0
    %251 = vmatpush1.msra.mxu0 0.0
    %252 = vmatprep.subr.mxu0 0.0
    %253 = vmatpush1.msra.mxu0 0.0
    %254 = vmatprep.subr.mxu0 0.0
    %255 = vmatpush1.msra.mxu0 0.0
    %256 = vmatprep.subr.mxu0 0.0
    %257 = vmatpush1.msra.mxu0 0.0
    %258 = vmatprep.subr.mxu0 0.0
    %259 = vmatpush1.msra.mxu0 0.0
    %260 = vmatprep.subr.mxu0 0.0
    %261 = vmatpush1.msra.mxu0 0.0
    %262 = vmatprep.subr.mxu0 0.0
    %263 = vmatpush1.msra.mxu0 0.0
    %264 = vmatprep.subr.mxu0 0.0
    %265 = vmatpush1.msra.mxu0 0.0
    %266 = vmatprep.subr.mxu0 0.0
    %267 = vmatpush1.msra.mxu0 0.0
    %268 = vmatprep.subr.mxu0 0.0
    %269 = vmatpush1.msra.mxu0 0.0
    %270 = vmatprep.subr.mxu0 0.0
    %271 = vmatpush1.msra.mxu0 0.0
    %272 = vmatprep.subr.mxu0 0.0
    %273 = vmatpush1.msra.mxu0 0.0
    %274 = vmatprep.subr.mxu0 0.0
    %275 = vmatpush1.msra.mxu0 0.0
    %276 = vmatprep.subr.mxu0 0.0
    %277 = vmatpush1.msra.mxu0 0.0
    %278 = vmatprep.subr.mxu0 0.0
    %279 = vmatpush1.msra.mxu0 0.0
    %280 = vmatprep.subr.mxu0 0.0
    %281 = vmatpush1.msra.mxu0 0.0
    %282 = vmatprep.subr.mxu0 0.0
    %283 = vmatpush1.msra.mxu0 0.0
    %284 = vmatprep.subr.mxu0 0.0
    %285 = vmatpush1.msra.mxu0 0.0
    %286 = vmatprep.subr.mxu0 0.0
    %287 = vmatpush1.msra.mxu0 0.0
    %288 = vmatprep.subr.mxu0 0.0
    %289 = vmatpush1.msra.mxu0 0.0
    %290 = vmatprep.subr.mxu0 0.0
    %291 = vmatpush1.msra.mxu0 0.0
    %292 = vmatprep.subr.mxu0 0.0
    %293 = vmatpush1.msra.mxu0 0.0
    %294 = vmatprep.subr.mxu0 0.0
    %295 = vmatpush1.msra.mxu0 0.0
    %296 = vmatprep.subr.mxu0 0.0
    %297 = vmatpush1.msra.mxu0 0.0
    %298 = vmatprep.subr.mxu0 0.0
    %299 = vmatpush1.msra.mxu0 0.0
    %300 = vmatprep.subr.mxu0 0.0
    %301 = vmatpush1.msra.mxu0 0.0
    %302 = vmatprep.subr.mxu0 0.0
    %303 = vmatpush1.msra.mxu0 0.0
    %304 = vmatprep.subr.mxu0 0.0
    %305 = vmatpush1.msra.mxu0 0.0
    %306 = vmatprep.subr.mxu0 0.0
    %307 = vmatpush1.msra.mxu0 0.0
    %308 = vmatprep.mubr.f32.mxu0 0.0
    %309 = vmatmul.mubr.f32.gmra.mrb[0].mxu0 %v242
    %v310 = vpop.f32.mrb[0].mxu0
    %v311 = vadd.f32 0.0, %v310
    %v312 = vpop.f32.mrb[0].mxu0
    %313 = vdwg.mxu0
    %314 = vrot.lane.b32.xlu0 %v137, 120
    %v315 = vpop.permute.xlu0 %314
    %316 = vrot.lane.b32.xlu0 %v137, 88
    %v317 = vpop.permute.xlu0 %316
    %v318 = vsel %vm152, %v315, 0
    %v320 = vsel %vm152, %v317, 0
    %322 = vmatprep.subr.mxu0 0.0
    %323 = vmatpush1.xpose.msra.mxu0 %v320
    %324 = vmatprep.subr.mxu0 0.0
    %325 = vmatpush1.xpose.msra.mxu0 0.0
    %326 = vmatprep.subr.mxu0 0.0
    %327 = vmatpush1.xpose.msra.mxu0 0.0
    %328 = vmatprep.subr.mxu0 0.0
    %329 = vmatpush1.xpose.msra.mxu0 0.0
    %330 = vmatprep.subr.mxu0 0.0
    %331 = vmatpush1.xpose.msra.mxu0 0.0
    %332 = vmatprep.subr.mxu0 0.0
    %333 = vmatpush1.xpose.msra.mxu0 0.0
    %334 = vmatprep.subr.mxu0 0.0
    %335 = vmatpush1.xpose.msra.mxu0 0.0
    %336 = vmatprep.subr.mxu0 0.0
    %337 = vmatpush1.xpose.msra.mxu0 0.0
    %338 = vmatprep.subr.mxu0 0.0
    %339 = vmatpush1.xpose.msra.mxu0 0.0
    %340 = vmatprep.subr.mxu0 0.0
    %341 = vmatpush1.xpose.msra.mxu0 0.0
    %342 = vmatprep.subr.mxu0 0.0
    %343 = vmatpush1.xpose.msra.mxu0 0.0
    %344 = vmatprep.subr.mxu0 0.0
    %345 = vmatpush1.xpose.msra.mxu0 0.0
    %346 = vmatprep.subr.mxu0 0.0
    %347 = vmatpush1.xpose.msra.mxu0 0.0
    %348 = vmatprep.subr.mxu0 0.0
    %349 = vmatpush1.xpose.msra.mxu0 0.0
    %350 = vmatprep.subr.mxu0 0.0
    %351 = vmatpush1.xpose.msra.mxu0 0.0
    %352 = vmatprep.subr.mxu0 0.0
    %353 = vmatpush1.xpose.msra.mxu0 0.0
    %354 = vmatprep.subr.mxu0 0.0
    %355 = vmatpush1.xpose.msra.mxu0 0.0
    %356 = vmatprep.subr.mxu0 0.0
    %357 = vmatpush1.xpose.msra.mxu0 0.0
    %358 = vmatprep.subr.mxu0 0.0
    %359 = vmatpush1.xpose.msra.mxu0 0.0
    %360 = vmatprep.subr.mxu0 0.0
    %361 = vmatpush1.xpose.msra.mxu0 0.0
    %362 = vmatprep.subr.mxu0 0.0
    %363 = vmatpush1.xpose.msra.mxu0 0.0
    %364 = vmatprep.subr.mxu0 0.0
    %365 = vmatpush1.xpose.msra.mxu0 0.0
    %366 = vmatprep.subr.mxu0 0.0
    %367 = vmatpush1.xpose.msra.mxu0 0.0
    %368 = vmatprep.subr.mxu0 0.0
    %369 = vmatpush1.xpose.msra.mxu0 0.0
    %370 = vmatprep.subr.mxu0 0.0
    %371 = vmatpush1.xpose.msra.mxu0 0.0
    %372 = vmatprep.subr.mxu0 0.0
    %373 = vmatpush1.xpose.msra.mxu0 0.0
    %374 = vmatprep.subr.mxu0 0.0
    %375 = vmatpush1.xpose.msra.mxu0 0.0
    %376 = vmatprep.subr.mxu0 0.0
    %377 = vmatpush1.xpose.msra.mxu0 0.0
    %378 = vmatprep.subr.mxu0 0.0
    %379 = vmatpush1.xpose.msra.mxu0 0.0
    %380 = vmatprep.subr.mxu0 0.0
    %381 = vmatpush1.xpose.msra.mxu0 0.0
    %382 = vmatprep.subr.mxu0 0.0
    %383 = vmatpush1.xpose.msra.mxu0 0.0
    %384 = vmatprep.subr.mxu0 0.0
    %385 = vmatpush1.xpose.msra.mxu0 0.0
    %386 = vmatprep.mubr.f32.mxu0 0.0
    %387 = vmatmul.mubr.f32.gmra.mrb[0].mxu0 %v318
    %v388 = vpop.f32.mrb[0].mxu0
    %v389 = vadd.f32 %v148, %v388
    %v390 = vpop.f32.mrb[0].mxu0
    %391 = vdwg.mxu0
    %v392 = vsel %vm152, %v389, -inf
    %393 = vmax.xlane.f32.xlu0 %v392
    %v394 = vpop.xlane.xlu0 %393
    %v395 = vsub.f32 %v389, %v394
    %v396 = vmul.f32 %v395, 1.442695
    %v397 = vpow.pop %v396
    %v398 = vsel %vm152, %v397, 0.0
    %399 = vadd.xlane.f32.xlu0 %v398
    %v400 = vpop.xlane.xlu0 %399
    %v401 = vrcp.pop %v400
    %v402 = vmul.f32 %v397, %v401
    %403 = vrot.lane.b32.xlu0 %v137, 56
    %v404 = vpop.permute.xlu0 %403
    %v407 = vsel %vm152, %v402, 0
    %409 = vmatprep.subr.mxu0 0.0
    %410 = vmatpush1.msra.mxu0 %v404
    %411 = vmatprep.subr.mxu0 0.0
    %412 = vmatpush1.msra.mxu0 0.0
    %413 = vmatprep.subr.mxu0 0.0
    %414 = vmatpush1.msra.mxu0 0.0
    %415 = vmatprep.subr.mxu0 0.0
    %416 = vmatpush1.msra.mxu0 0.0
    %417 = vmatprep.subr.mxu0 0.0
    %418 = vmatpush1.msra.mxu0 0.0
    %419 = vmatprep.subr.mxu0 0.0
    %420 = vmatpush1.msra.mxu0 0.0
    %421 = vmatprep.subr.mxu0 0.0
    %422 = vmatpush1.msra.mxu0 0.0
    %423 = vmatprep.subr.mxu0 0.0
    %424 = vmatpush1.msra.mxu0 0.0
    %425 = vmatprep.subr.mxu0 0.0
    %426 = vmatpush1.msra.mxu0 0.0
    %427 = vmatprep.subr.mxu0 0.0
    %428 = vmatpush1.msra.mxu0 0.0
    %429 = vmatprep.subr.mxu0 0.0
    %430 = vmatpush1.msra.mxu0 0.0
    %431 = vmatprep.subr.mxu0 0.0
    %432 = vmatpush1.msra.mxu0 0.0
    %433 = vmatprep.subr.mxu0 0.0
    %434 = vmatpush1.msra.mxu0 0.0
    %435 = vmatprep.subr.mxu0 0.0
    %436 = vmatpush1.msra.mxu0 0.0
    %437 = vmatprep.subr.mxu0 0.0
    %438 = vmatpush1.msra.mxu0 0.0
    %439 = vmatprep.subr.mxu0 0.0
    %440 = vmatpush1.msra.mxu0 0.0
    %441 = vmatprep.subr.mxu0 0.0
    %442 = vmatpush1.msra.mxu0 0.0
    %443 = vmatprep.subr.mxu0 0.0
    %444 = vmatpush1.msra.mxu0 0.0
    %445 = vmatprep.subr.mxu0 0.0
    %446 = vmatpush1.msra.mxu0 0.0
    %447 = vmatprep.subr.mxu0 0.0
    %448 = vmatpush1.msra.mxu0 0.0
    %449 = vmatprep.subr.mxu0 0.0
    %450 = vmatpush1.msra.mxu0 0.0
    %451 = vmatprep.subr.mxu0 0.0
    %452 = vmatpush1.msra.mxu0 0.0
    %453 = vmatprep.subr.mxu0 0.0
    %454 = vmatpush1.msra.mxu0 0.0
    %455 = vmatprep.subr.mxu0 0.0
    %456 = vmatpush1.msra.mxu0 0.0
    %457 = vmatprep.subr.mxu0 0.0
    %458 = vmatpush1.msra.mxu0 0.0
    %459 = vmatprep.subr.mxu0 0.0
    %460 = vmatpush1.msra.mxu0 0.0
    %461 = vmatprep.subr.mxu0 0.0
    %462 = vmatpush1.msra.mxu0 0.0
    %463 = vmatprep.subr.mxu0 0.0
    %464 = vmatpush1.msra.mxu0 0.0
    %465 = vmatprep.subr.mxu0 0.0
    %466 = vmatpush1.msra.mxu0 0.0
    %467 = vmatprep.subr.mxu0 0.0
    %468 = vmatpush1.msra.mxu0 0.0
    %469 = vmatprep.subr.mxu0 0.0
    %470 = vmatpush1.msra.mxu0 0.0
    %471 = vmatprep.subr.mxu0 0.0
    %472 = vmatpush1.msra.mxu0 0.0
    %473 = vmatprep.mubr.f32.mxu0 0.0
    %474 = vmatmul.mubr.f32.gmra.mrb[0].mxu0 %v407
    %v475 = vpop.f32.mrb[0].mxu0
    %v476 = vadd.f32 0.0, %v475
    %v477 = vpop.f32.mrb[0].mxu0
    %478 = vdwg.mxu0
    %479 = vrot.lane.b32.xlu0 %v137, 112
    %v480 = vpop.permute.xlu0 %479
    %481 = vrot.lane.b32.xlu0 %v137, 80
    %v482 = vpop.permute.xlu0 %481
    %v483 = vsel %vm152, %v480, 0
    %v485 = vsel %vm152, %v482, 0
    %487 = vmatprep.subr.mxu0 0.0
    %488 = vmatpush1.xpose.msra.mxu0 %v485
    %489 = vmatprep.subr.mxu0 0.0
    %490 = vmatpush1.xpose.msra.mxu0 0.0
    %491 = vmatprep.subr.mxu0 0.0
    %492 = vmatpush1.xpose.msra.mxu0 0.0
    %493 = vmatprep.subr.mxu0 0.0
    %494 = vmatpush1.xpose.msra.mxu0 0.0
    %495 = vmatprep.subr.mxu0 0.0
    %496 = vmatpush1.xpose.msra.mxu0 0.0
    %497 = vmatprep.subr.mxu0 0.0
    %498 = vmatpush1.xpose.msra.mxu0 0.0
    %499 = vmatprep.subr.mxu0 0.0
    %500 = vmatpush1.xpose.msra.mxu0 0.0
    %501 = vmatprep.subr.mxu0 0.0
    %502 = vmatpush1.xpose.msra.mxu0 0.0
    %503 = vmatprep.subr.mxu0 0.0
    %504 = vmatpush1.xpose.msra.mxu0 0.0
    %505 = vmatprep.subr.mxu0 0.0
    %506 = vmatpush1.xpose.msra.mxu0 0.0
    %507 = vmatprep.subr.mxu0 0.0
    %508 = vmatpush1.xpose.msra.mxu0 0.0
    %509 = vmatprep.subr.mxu0 0.0
    %510 = vmatpush1.xpose.msra.mxu0 0.0
    %511 = vmatprep.subr.mxu0 0.0
    %512 = vmatpush1.xpose.msra.mxu0 0.0
    %513 = vmatprep.subr.mxu0 0.0
    %514 = vmatpush1.xpose.msra.mxu0 0.0
    %515 = vmatprep.subr.mxu0 0.0
    %516 = vmatpush1.xpose.msra.mxu0 0.0
    %517 = vmatprep.subr.mxu0 0.0
    %518 = vmatpush1.xpose.msra.mxu0 0.0
    %519 = vmatprep.subr.mxu0 0.0
    %520 = vmatpush1.xpose.msra.mxu0 0.0
    %521 = vmatprep.subr.mxu0 0.0
    %522 = vmatpush1.xpose.msra.mxu0 0.0
    %523 = vmatprep.subr.mxu0 0.0
    %524 = vmatpush1.xpose.msra.mxu0 0.0
    %525 = vmatprep.subr.mxu0 0.0
    %526 = vmatpush1.xpose.msra.mxu0 0.0
    %527 = vmatprep.subr.mxu0 0.0
    %528 = vmatpush1.xpose.msra.mxu0 0.0
    %529 = vmatprep.subr.mxu0 0.0
    %530 = vmatpush1.xpose.msra.mxu0 0.0
    %531 = vmatprep.subr.mxu0 0.0
    %532 = vmatpush1.xpose.msra.mxu0 0.0
    %533 = vmatprep.subr.mxu0 0.0
    %534 = vmatpush1.xpose.msra.mxu0 0.0
    %535 = vmatprep.subr.mxu0 0.0
    %536 = vmatpush1.xpose.msra.mxu0 0.0
    %537 = vmatprep.subr.mxu0 0.0
    %538 = vmatpush1.xpose.msra.mxu0 0.0
    %539 = vmatprep.subr.mxu0 0.0
    %540 = vmatpush1.xpose.msra.mxu0 0.0
    %541 = vmatprep.subr.mxu0 0.0
    %542 = vmatpush1.xpose.msra.mxu0 0.0
    %543 = vmatprep.subr.mxu0 0.0
    %544 = vmatpush1.xpose.msra.mxu0 0.0
    %545 = vmatprep.subr.mxu0 0.0
    %546 = vmatpush1.xpose.msra.mxu0 0.0
    %547 = vmatprep.subr.mxu0 0.0
    %548 = vmatpush1.xpose.msra.mxu0 0.0
    %549 = vmatprep.subr.mxu0 0.0
    %550 = vmatpush1.xpose.msra.mxu0 0.0
    %551 = vmatprep.mubr.f32.mxu0 0.0
    %552 = vmatmul.mubr.f32.gmra.mrb[0].mxu0 %v483
    %v553 = vpop.f32.mrb[0].mxu0
    %v554 = vadd.f32 %v148, %v553
    %v555 = vpop.f32.mrb[0].mxu0
    %556 = vdwg.mxu0
    %v557 = vsel %vm152, %v554, -inf
    %558 = vmax.xlane.f32.xlu0 %v557
    %v559 = vpop.xlane.xlu0 %558
    %v560 = vsub.f32 %v554, %v559
    %v561 = vmul.f32 %v560, 1.442695
    %v562 = vpow.pop %v561
    %v563 = vsel %vm152, %v562, 0.0
    %564 = vadd.xlane.f32.xlu0 %v563
    %v565 = vpop.xlane.xlu0 %564
    %v566 = vrcp.pop %v565
    %v567 = vmul.f32 %v562, %v566
    %568 = vrot.lane.b32.xlu0 %v137, 48
    %v569 = vpop.permute.xlu0 %568
    %v572 = vsel %vm152, %v567, 0
    %574 = vmatprep.subr.mxu0 0.0
    %575 = vmatpush1.msra.mxu0 %v569
    %576 = vmatprep.subr.mxu0 0.0
    %577 = vmatpush1.msra.mxu0 0.0
    %578 = vmatprep.subr.mxu0 0.0
    %579 = vmatpush1.msra.mxu0 0.0
    %580 = vmatprep.subr.mxu0 0.0
    %581 = vmatpush1.msra.mxu0 0.0
    %582 = vmatprep.subr.mxu0 0.0
    %583 = vmatpush1.msra.mxu0 0.0
    %584 = vmatprep.subr.mxu0 0.0
    %585 = vmatpush1.msra.mxu0 0.0
    %586 = vmatprep.subr.mxu0 0.0
    %587 = vmatpush1.msra.mxu0 0.0
    %588 = vmatprep.subr.mxu0 0.0
    %589 = vmatpush1.msra.mxu0 0.0
    %590 = vmatprep.subr.mxu0 0.0
    %591 = vmatpush1.msra.mxu0 0.0
    %592 = vmatprep.subr.mxu0 0.0
    %593 = vmatpush1.msra.mxu0 0.0
    %594 = vmatprep.subr.mxu0 0.0
    %595 = vmatpush1.msra.mxu0 0.0
    %596 = vmatprep.subr.mxu0 0.0
    %597 = vmatpush1.msra.mxu0 0.0
    %598 = vmatprep.subr.mxu0 0.0
    %599 = vmatpush1.msra.mxu0 0.0
    %600 = vmatprep.subr.mxu0 0.0
    %601 = vmatpush1.msra.mxu0 0.0
    %602 = vmatprep.subr.mxu0 0.0
    %603 = vmatpush1.msra.mxu0 0.0
    %604 = vmatprep.subr.mxu0 0.0
    %605 = vmatpush1.msra.mxu0 0.0
    %606 = vmatprep.subr.mxu0 0.0
    %607 = vmatpush1.msra.mxu0 0.0
    %608 = vmatprep.subr.mxu0 0.0
    %609 = vmatpush1.msra.mxu0 0.0
    %610 = vmatprep.subr.mxu0 0.0
    %611 = vmatpush1.msra.mxu0 0.0
    %612 = vmatprep.subr.mxu0 0.0
    %613 = vmatpush1.msra.mxu0 0.0
    %614 = vmatprep.subr.mxu0 0.0
    %615 = vmatpush1.msra.mxu0 0.0
    %616 = vmatprep.subr.mxu0 0.0
    %617 = vmatpush1.msra.mxu0 0.0
    %618 = vmatprep.subr.mxu0 0.0
    %619 = vmatpush1.msra.mxu0 0.0
    %620 = vmatprep.subr.mxu0 0.0
    %621 = vmatpush1.msra.mxu0 0.0
    %622 = vmatprep.subr.mxu0 0.0
    %623 = vmatpush1.msra.mxu0 0.0
    %624 = vmatprep.subr.mxu0 0.0
    %625 = vmatpush1.msra.mxu0 0.0
    %626 = vmatprep.subr.mxu0 0.0
    %627 = vmatpush1.msra.mxu0 0.0
    %628 = vmatprep.subr.mxu0 0.0
    %629 = vmatpush1.msra.mxu0 0.0
    %630 = vmatprep.subr.mxu0 0.0
    %631 = vmatpush1.msra.mxu0 0.0
    %632 = vmatprep.subr.mxu0 0.0
    %633 = vmatpush1.msra.mxu0 0.0
    %634 = vmatprep.subr.mxu0 0.0
    %635 = vmatpush1.msra.mxu0 0.0
    %636 = vmatprep.subr.mxu0 0.0
    %637 = vmatpush1.msra.mxu0 0.0
    %638 = vmatprep.mubr.f32.mxu0 0.0
    %639 = vmatmul.mubr.f32.gmra.mrb[0].mxu0 %v572
    %v640 = vpop.f32.mrb[0].mxu0
    %v641 = vadd.f32 0.0, %v640
    %v642 = vpop.f32.mrb[0].mxu0
    %643 = vdwg.mxu0
    %644 = vrot.lane.b32.xlu0 %v137, 104
    %v645 = vpop.permute.xlu0 %644
    %646 = vrot.lane.b32.xlu0 %v137, 72
    %v647 = vpop.permute.xlu0 %646
    %v648 = vsel %vm152, %v645, 0
    %v650 = vsel %vm152, %v647, 0
    %652 = vmatprep.subr.mxu0 0.0
    %653 = vmatpush1.xpose.msra.mxu0 %v650
    %654 = vmatprep.subr.mxu0 0.0
    %655 = vmatpush1.xpose.msra.mxu0 0.0
    %656 = vmatprep.subr.mxu0 0.0
    %657 = vmatpush1.xpose.msra.mxu0 0.0
    %658 = vmatprep.subr.mxu0 0.0
    %659 = vmatpush1.xpose.msra.mxu0 0.0
    %660 = vmatprep.subr.mxu0 0.0
    %661 = vmatpush1.xpose.msra.mxu0 0.0
    %662 = vmatprep.subr.mxu0 0.0
    %663 = vmatpush1.xpose.msra.mxu0 0.0
    %664 = vmatprep.subr.mxu0 0.0
    %665 = vmatpush1.xpose.msra.mxu0 0.0
    %666 = vmatprep.subr.mxu0 0.0
    %667 = vmatpush1.xpose.msra.mxu0 0.0
    %668 = vmatprep.subr.mxu0 0.0
    %669 = vmatpush1.xpose.msra.mxu0 0.0
    %670 = vmatprep.subr.mxu0 0.0
    %671 = vmatpush1.xpose.msra.mxu0 0.0
    %672 = vmatprep.subr.mxu0 0.0
    %673 = vmatpush1.xpose.msra.mxu0 0.0
    %674 = vmatprep.subr.mxu0 0.0
    %675 = vmatpush1.xpose.msra.mxu0 0.0
    %676 = vmatprep.subr.mxu0 0.0
    %677 = vmatpush1.xpose.msra.mxu0 0.0
    %678 = vmatprep.subr.mxu0 0.0
    %679 = vmatpush1.xpose.msra.mxu0 0.0
    %680 = vmatprep.subr.mxu0 0.0
    %681 = vmatpush1.xpose.msra.mxu0 0.0
    %682 = vmatprep.subr.mxu0 0.0
    %683 = vmatpush1.xpose.msra.mxu0 0.0
    %684 = vmatprep.subr.mxu0 0.0
    %685 = vmatpush1.xpose.msra.mxu0 0.0
    %686 = vmatprep.subr.mxu0 0.0
    %687 = vmatpush1.xpose.msra.mxu0 0.0
    %688 = vmatprep.subr.mxu0 0.0
    %689 = vmatpush1.xpose.msra.mxu0 0.0
    %690 = vmatprep.subr.mxu0 0.0
    %691 = vmatpush1.xpose.msra.mxu0 0.0
    %692 = vmatprep.subr.mxu0 0.0
    %693 = vmatpush1.xpose.msra.mxu0 0.0
    %694 = vmatprep.subr.mxu0 0.0
    %695 = vmatpush1.xpose.msra.mxu0 0.0
    %696 = vmatprep.subr.mxu0 0.0
    %697 = vmatpush1.xpose.msra.mxu0 0.0
    %698 = vmatprep.subr.mxu0 0.0
    %699 = vmatpush1.xpose.msra.mxu0 0.0
    %700 = vmatprep.subr.mxu0 0.0
    %701 = vmatpush1.xpose.msra.mxu0 0.0
    %702 = vmatprep.subr.mxu0 0.0
    %703 = vmatpush1.xpose.msra.mxu0 0.0
    %704 = vmatprep.subr.mxu0 0.0
    %705 = vmatpush1.xpose.msra.mxu0 0.0
    %706 = vmatprep.subr.mxu0 0.0
    %707 = vmatpush1.xpose.msra.mxu0 0.0
    %708 = vmatprep.subr.mxu0 0.0
    %709 = vmatpush1.xpose.msra.mxu0 0.0
    %710 = vmatprep.subr.mxu0 0.0
    %711 = vmatpush1.xpose.msra.mxu0 0.0
    %712 = vmatprep.subr.mxu0 0.0
    %713 = vmatpush1.xpose.msra.mxu0 0.0
    %714 = vmatprep.subr.mxu0 0.0
    %715 = vmatpush1.xpose.msra.mxu0 0.0
    %716 = vmatprep.mubr.f32.mxu0 0.0
    %717 = vmatmul.mubr.f32.gmra.mrb[0].mxu0 %v648
    %v718 = vpop.f32.mrb[0].mxu0
    %v719 = vadd.f32 %v148, %v718
    %v720 = vpop.f32.mrb[0].mxu0
    %721 = vdwg.mxu0
    %v722 = vsel %vm152, %v719, -inf
    %723 = vmax.xlane.f32.xlu0 %v722
    %v724 = vpop.xlane.xlu0 %723
    %v725 = vsub.f32 %v719, %v724
    %v726 = vmul.f32 %v725, 1.442695
    %v727 = vpow.pop %v726
    %v728 = vsel %vm152, %v727, 0.0
    %729 = vadd.xlane.f32.xlu0 %v728
    %v730 = vpop.xlane.xlu0 %729
    %v731 = vrcp.pop %v730
    %v732 = vmul.f32 %v727, %v731
    %733 = vrot.lane.b32.xlu0 %v137, 40
    %v734 = vpop.permute.xlu0 %733
    %v737 = vsel %vm152, %v732, 0
    %739 = vmatprep.subr.mxu0 0.0
    %740 = vmatpush1.msra.mxu0 %v734
    %741 = vmatprep.subr.mxu0 0.0
    %742 = vmatpush1.msra.mxu0 0.0
    %743 = vmatprep.subr.mxu0 0.0
    %744 = vmatpush1.msra.mxu0 0.0
    %745 = vmatprep.subr.mxu0 0.0
    %746 = vmatpush1.msra.mxu0 0.0
    %747 = vmatprep.subr.mxu0 0.0
    %748 = vmatpush1.msra.mxu0 0.0
    %749 = vmatprep.subr.mxu0 0.0
    %750 = vmatpush1.msra.mxu0 0.0
    %751 = vmatprep.subr.mxu0 0.0
    %752 = vmatpush1.msra.mxu0 0.0
    %753 = vmatprep.subr.mxu0 0.0
    %754 = vmatpush1.msra.mxu0 0.0
    %755 = vmatprep.subr.mxu0 0.0
    %756 = vmatpush1.msra.mxu0 0.0
    %757 = vmatprep.subr.mxu0 0.0
    %758 = vmatpush1.msra.mxu0 0.0
    %759 = vmatprep.subr.mxu0 0.0
    %760 = vmatpush1.msra.mxu0 0.0
    %761 = vmatprep.subr.mxu0 0.0
    %762 = vmatpush1.msra.mxu0 0.0
    %763 = vmatprep.subr.mxu0 0.0
    %764 = vmatpush1.msra.mxu0 0.0
    %765 = vmatprep.subr.mxu0 0.0
    %766 = vmatpush1.msra.mxu0 0.0
    %767 = vmatprep.subr.mxu0 0.0
    %768 = vmatpush1.msra.mxu0 0.0
    %769 = vmatprep.subr.mxu0 0.0
    %770 = vmatpush1.msra.mxu0 0.0
    %771 = vmatprep.subr.mxu0 0.0
    %772 = vmatpush1.msra.mxu0 0.0
    %773 = vmatprep.subr.mxu0 0.0
    %774 = vmatpush1.msra.mxu0 0.0
    %775 = vmatprep.subr.mxu0 0.0
    %776 = vmatpush1.msra.mxu0 0.0
    %777 = vmatprep.subr.mxu0 0.0
    %778 = vmatpush1.msra.mxu0 0.0
    %779 = vmatprep.subr.mxu0 0.0
    %780 = vmatpush1.msra.mxu0 0.0
    %781 = vmatprep.subr.mxu0 0.0
    %782 = vmatpush1.msra.mxu0 0.0
    %783 = vmatprep.subr.mxu0 0.0
    %784 = vmatpush1.msra.mxu0 0.0
    %785 = vmatprep.subr.mxu0 0.0
    %786 = vmatpush1.msra.mxu0 0.0
    %787 = vmatprep.subr.mxu0 0.0
    %788 = vmatpush1.msra.mxu0 0.0
    %789 = vmatprep.subr.mxu0 0.0
    %790 = vmatpush1.msra.mxu0 0.0
    %791 = vmatprep.subr.mxu0 0.0
    %792 = vmatpush1.msra.mxu0 0.0
    %793 = vmatprep.subr.mxu0 0.0
    %794 = vmatpush1.msra.mxu0 0.0
    %795 = vmatprep.subr.mxu0 0.0
    %796 = vmatpush1.msra.mxu0 0.0
    %797 = vmatprep.subr.mxu0 0.0
    %798 = vmatpush1.msra.mxu0 0.0
    %799 = vmatprep.subr.mxu0 0.0
    %800 = vmatpush1.msra.mxu0 0.0
    %801 = vmatprep.subr.mxu0 0.0
    %802 = vmatpush1.msra.mxu0 0.0
    %803 = vmatprep.mubr.f32.mxu0 0.0
    %804 = vmatmul.mubr.f32.gmra.mrb[0].mxu0 %v737
    %v805 = vpop.f32.mrb[0].mxu0
    %v806 = vadd.f32 0.0, %v805
    %v807 = vpop.f32.mrb[0].mxu0
    %808 = vdwg.mxu0
    %810 = vrot.lane.b32.xlu0 %v476, 8
    %v811 = vpop.permute.xlu0 %810
    %814 = vrot.lane.b32.xlu0 %v641, 16
    %v815 = vpop.permute.xlu0 %814
    %818 = vrot.lane.b32.xlu0 %v806, 24
    %v819 = vpop.permute.xlu0 %818
    %v821 = vsel %vm152, %v311, %v811
    %vm822 = vcmask 130048
    %v823 = vsel %vm822, %v821, %v815
    %vm824 = vcmask 195584
    %v825 = vsel %vm824, %v823, %v819
    %v826 = vlaneseq
    %v827 = vshrl.u32 %v826, 7
    %v828 = vsub.s32 1, %v827
    %v829 = vrot.slane %v51, %v828
    %831 = vrot.lane.b32.xlu0 %v142, 96
    %v832 = vpop.permute.xlu0 %831
    %v833 = vsel %vm152, %v142, 0
    %v835 = vsel %vm152, %v832, 0
    %837 = vmatprep.subr.mxu0 0.0
    %838 = vmatpush1.xpose.msra.mxu0 %v835
    %839 = vmatprep.subr.mxu0 0.0
    %840 = vmatpush1.xpose.msra.mxu0 0.0
    %841 = vmatprep.subr.mxu0 0.0
    %842 = vmatpush1.xpose.msra.mxu0 0.0
    %843 = vmatprep.subr.mxu0 0.0
    %844 = vmatpush1.xpose.msra.mxu0 0.0
    %845 = vmatprep.subr.mxu0 0.0
    %846 = vmatpush1.xpose.msra.mxu0 0.0
    %847 = vmatprep.subr.mxu0 0.0
    %848 = vmatpush1.xpose.msra.mxu0 0.0
    %849 = vmatprep.subr.mxu0 0.0
    %850 = vmatpush1.xpose.msra.mxu0 0.0
    %851 = vmatprep.subr.mxu0 0.0
    %852 = vmatpush1.xpose.msra.mxu0 0.0
    %853 = vmatprep.subr.mxu0 0.0
    %854 = vmatpush1.xpose.msra.mxu0 0.0
    %855 = vmatprep.subr.mxu0 0.0
    %856 = vmatpush1.xpose.msra.mxu0 0.0
    %857 = vmatprep.subr.mxu0 0.0
    %858 = vmatpush1.xpose.msra.mxu0 0.0
    %859 = vmatprep.subr.mxu0 0.0
    %860 = vmatpush1.xpose.msra.mxu0 0.0
    %861 = vmatprep.subr.mxu0 0.0
    %862 = vmatpush1.xpose.msra.mxu0 0.0
    %863 = vmatprep.subr.mxu0 0.0
    %864 = vmatpush1.xpose.msra.mxu0 0.0
    %865 = vmatprep.subr.mxu0 0.0
    %866 = vmatpush1.xpose.msra.mxu0 0.0
    %867 = vmatprep.subr.mxu0 0.0
    %868 = vmatpush1.xpose.msra.mxu0 0.0
    %869 = vmatprep.subr.mxu0 0.0
    %870 = vmatpush1.xpose.msra.mxu0 0.0
    %871 = vmatprep.subr.mxu0 0.0
    %872 = vmatpush1.xpose.msra.mxu0 0.0
    %873 = vmatprep.subr.mxu0 0.0
    %874 = vmatpush1.xpose.msra.mxu0 0.0
    %875 = vmatprep.subr.mxu0 0.0
    %876 = vmatpush1.xpose.msra.mxu0 0.0
    %877 = vmatprep.subr.mxu0 0.0
    %878 = vmatpush1.xpose.msra.mxu0 0.0
    %879 = vmatprep.subr.mxu0 0.0
    %880 = vmatpush1.xpose.msra.mxu0 0.0
    %881 = vmatprep.subr.mxu0 0.0
    %882 = vmatpush1.xpose.msra.mxu0 0.0
    %883 = vmatprep.subr.mxu0 0.0
    %884 = vmatpush1.xpose.msra.mxu0 0.0
    %885 = vmatprep.subr.mxu0 0.0
    %886 = vmatpush1.xpose.msra.mxu0 0.0
    %887 = vmatprep.subr.mxu0 0.0
    %888 = vmatpush1.xpose.msra.mxu0 0.0
    %889 = vmatprep.subr.mxu0 0.0
    %890 = vmatpush1.xpose.msra.mxu0 0.0
    %891 = vmatprep.subr.mxu0 0.0
    %892 = vmatpush1.xpose.msra.mxu0 0.0
    %893 = vmatprep.subr.mxu0 0.0
    %894 = vmatpush1.xpose.msra.mxu0 0.0
    %895 = vmatprep.subr.mxu0 0.0
    %896 = vmatpush1.xpose.msra.mxu0 0.0
    %897 = vmatprep.subr.mxu0 0.0
    %898 = vmatpush1.xpose.msra.mxu0 0.0
    %899 = vmatprep.subr.mxu0 0.0
    %900 = vmatpush1.xpose.msra.mxu0 0.0
    %901 = vmatprep.mubr.f32.mxu0 0.0
    %902 = vmatmul.mubr.f32.gmra.mrb[0].mxu0 %v833
    %v903 = vpop.f32.mrb[0].mxu0
    %v904 = vadd.f32 %v829, %v903
    %v905 = vpop.f32.mrb[0].mxu0
    %906 = vdwg.mxu0
    %v907 = vsel %vm152, %v904, -inf
    %908 = vmax.xlane.f32.xlu0 %v907
    %v909 = vpop.xlane.xlu0 %908
    %v910 = vsub.f32 %v904, %v909
    %v911 = vmul.f32 %v910, 1.442695
    %v912 = vpow.pop %v911
    %v913 = vsel %vm152, %v912, 0.0
    %914 = vadd.xlane.f32.xlu0 %v913
    %v915 = vpop.xlane.xlu0 %914
    %v916 = vrcp.pop %v915
    %v917 = vmul.f32 %v912, %v916
    %918 = vrot.lane.b32.xlu0 %v142, 64
    %v919 = vpop.permute.xlu0 %918
    %v922 = vsel %vm152, %v917, 0
    %924 = vmatprep.subr.mxu0 0.0
    %925 = vmatpush1.msra.mxu0 %v919
    %926 = vmatprep.subr.mxu0 0.0
    %927 = vmatpush1.msra.mxu0 0.0
    %928 = vmatprep.subr.mxu0 0.0
    %929 = vmatpush1.msra.mxu0 0.0
    %930 = vmatprep.subr.mxu0 0.0
    %931 = vmatpush1.msra.mxu0 0.0
    %932 = vmatprep.subr.mxu0 0.0
    %933 = vmatpush1.msra.mxu0 0.0
    %934 = vmatprep.subr.mxu0 0.0
    %935 = vmatpush1.msra.mxu0 0.0
    %936 = vmatprep.subr.mxu0 0.0
    %937 = vmatpush1.msra.mxu0 0.0
    %938 = vmatprep.subr.mxu0 0.0
    %939 = vmatpush1.msra.mxu0 0.0
    %940 = vmatprep.subr.mxu0 0.0
    %941 = vmatpush1.msra.mxu0 0.0
    %942 = vmatprep.subr.mxu0 0.0
    %943 = vmatpush1.msra.mxu0 0.0
    %944 = vmatprep.subr.mxu0 0.0
    %945 = vmatpush1.msra.mxu0 0.0
    %946 = vmatprep.subr.mxu0 0.0
    %947 = vmatpush1.msra.mxu0 0.0
    %948 = vmatprep.subr.mxu0 0.0
    %949 = vmatpush1.msra.mxu0 0.0
    %950 = vmatprep.subr.mxu0 0.0
    %951 = vmatpush1.msra.mxu0 0.0
    %952 = vmatprep.subr.mxu0 0.0
    %953 = vmatpush1.msra.mxu0 0.0
    %954 = vmatprep.subr.mxu0 0.0
    %955 = vmatpush1.msra.mxu0 0.0
    %956 = vmatprep.subr.mxu0 0.0
    %957 = vmatpush1.msra.mxu0 0.0
    %958 = vmatprep.subr.mxu0 0.0
    %959 = vmatpush1.msra.mxu0 0.0
    %960 = vmatprep.subr.mxu0 0.0
    %961 = vmatpush1.msra.mxu0 0.0
    %962 = vmatprep.subr.mxu0 0.0
    %963 = vmatpush1.msra.mxu0 0.0
    %964 = vmatprep.subr.mxu0 0.0
    %965 = vmatpush1.msra.mxu0 0.0
    %966 = vmatprep.subr.mxu0 0.0
    %967 = vmatpush1.msra.mxu0 0.0
    %968 = vmatprep.subr.mxu0 0.0
    %969 = vmatpush1.msra.mxu0 0.0
    %970 = vmatprep.subr.mxu0 0.0
    %971 = vmatpush1.msra.mxu0 0.0
    %972 = vmatprep.subr.mxu0 0.0
    %973 = vmatpush1.msra.mxu0 0.0
    %974 = vmatprep.subr.mxu0 0.0
    %975 = vmatpush1.msra.mxu0 0.0
    %976 = vmatprep.subr.mxu0 0.0
    %977 = vmatpush1.msra.mxu0 0.0
    %978 = vmatprep.subr.mxu0 0.0
    %979 = vmatpush1.msra.mxu0 0.0
    %980 = vmatprep.subr.mxu0 0.0
    %981 = vmatpush1.msra.mxu0 0.0
    %982 = vmatprep.subr.mxu0 0.0
    %983 = vmatpush1.msra.mxu0 0.0
    %984 = vmatprep.subr.mxu0 0.0
    %985 = vmatpush1.msra.mxu0 0.0
    %986 = vmatprep.subr.mxu0 0.0
    %987 = vmatpush1.msra.mxu0 0.0
    %988 = vmatprep.mubr.f32.mxu0 0.0
    %989 = vmatmul.mubr.f32.gmra.mrb[0].mxu0 %v922
    %v990 = vpop.f32.mrb[0].mxu0
    %v991 = vadd.f32 0.0, %v990
    %v992 = vpop.f32.mrb[0].mxu0
    %993 = vdwg.mxu0
    %994 = vrot.lane.b32.xlu0 %v142, 120
    %v995 = vpop.permute.xlu0 %994
    %996 = vrot.lane.b32.xlu0 %v142, 88
    %v997 = vpop.permute.xlu0 %996
    %v998 = vsel %vm152, %v995, 0
    %v1000 = vsel %vm152, %v997, 0
    %1002 = vmatprep.subr.mxu0 0.0
    %1003 = vmatpush1.xpose.msra.mxu0 %v1000
    %1004 = vmatprep.subr.mxu0 0.0
    %1005 = vmatpush1.xpose.msra.mxu0 0.0
    %1006 = vmatprep.subr.mxu0 0.0
    %1007 = vmatpush1.xpose.msra.mxu0 0.0
    %1008 = vmatprep.subr.mxu0 0.0
    %1009 = vmatpush1.xpose.msra.mxu0 0.0
    %1010 = vmatprep.subr.mxu0 0.0
    %1011 = vmatpush1.xpose.msra.mxu0 0.0
    %1012 = vmatprep.subr.mxu0 0.0
    %1013 = vmatpush1.xpose.msra.mxu0 0.0
    %1014 = vmatprep.subr.mxu0 0.0
    %1015 = vmatpush1.xpose.msra.mxu0 0.0
    %1016 = vmatprep.subr.mxu0 0.0
    %1017 = vmatpush1.xpose.msra.mxu0 0.0
    %1018 = vmatprep.subr.mxu0 0.0
    %1019 = vmatpush1.xpose.msra.mxu0 0.0
    %1020 = vmatprep.subr.mxu0 0.0
    %1021 = vmatpush1.xpose.msra.mxu0 0.0
    %1022 = vmatprep.subr.mxu0 0.0
    %1023 = vmatpush1.xpose.msra.mxu0 0.0
    %1024 = vmatprep.subr.mxu0 0.0
    %1025 = vmatpush1.xpose.msra.mxu0 0.0
    %1026 = vmatprep.subr.mxu0 0.0
    %1027 = vmatpush1.xpose.msra.mxu0 0.0
    %1028 = vmatprep.subr.mxu0 0.0
    %1029 = vmatpush1.xpose.msra.mxu0 0.0
    %1030 = vmatprep.subr.mxu0 0.0
    %1031 = vmatpush1.xpose.msra.mxu0 0.0
    %1032 = vmatprep.subr.mxu0 0.0
    %1033 = vmatpush1.xpose.msra.mxu0 0.0
    %1034 = vmatprep.subr.mxu0 0.0
    %1035 = vmatpush1.xpose.msra.mxu0 0.0
    %1036 = vmatprep.subr.mxu0 0.0
    %1037 = vmatpush1.xpose.msra.mxu0 0.0
    %1038 = vmatprep.subr.mxu0 0.0
    %1039 = vmatpush1.xpose.msra.mxu0 0.0
    %1040 = vmatprep.subr.mxu0 0.0
    %1041 = vmatpush1.xpose.msra.mxu0 0.0
    %1042 = vmatprep.subr.mxu0 0.0
    %1043 = vmatpush1.xpose.msra.mxu0 0.0
    %1044 = vmatprep.subr.mxu0 0.0
    %1045 = vmatpush1.xpose.msra.mxu0 0.0
    %1046 = vmatprep.subr.mxu0 0.0
    %1047 = vmatpush1.xpose.msra.mxu0 0.0
    %1048 = vmatprep.subr.mxu0 0.0
    %1049 = vmatpush1.xpose.msra.mxu0 0.0
    %1050 = vmatprep.subr.mxu0 0.0
    %1051 = vmatpush1.xpose.msra.mxu0 0.0
    %1052 = vmatprep.subr.mxu0 0.0
    %1053 = vmatpush1.xpose.msra.mxu0 0.0
    %1054 = vmatprep.subr.mxu0 0.0
    %1055 = vmatpush1.xpose.msra.mxu0 0.0
    %1056 = vmatprep.subr.mxu0 0.0
    %1057 = vmatpush1.xpose.msra.mxu0 0.0
    %1058 = vmatprep.subr.mxu0 0.0
    %1059 = vmatpush1.xpose.msra.mxu0 0.0
    %1060 = vmatprep.subr.mxu0 0.0
    %1061 = vmatpush1.xpose.msra.mxu0 0.0
    %1062 = vmatprep.subr.mxu0 0.0
    %1063 = vmatpush1.xpose.msra.mxu0 0.0
    %1064 = vmatprep.subr.mxu0 0.0
    %1065 = vmatpush1.xpose.msra.mxu0 0.0
    %1066 = vmatprep.mubr.f32.mxu0 0.0
    %1067 = vmatmul.mubr.f32.gmra.mrb[0].mxu0 %v998
    %v1068 = vpop.f32.mrb[0].mxu0
    %v1069 = vadd.f32 %v829, %v1068
    %v1070 = vpop.f32.mrb[0].mxu0
    %1071 = vdwg.mxu0
    %v1072 = vsel %vm152, %v1069, -inf
    %1073 = vmax.xlane.f32.xlu0 %v1072
    %v1074 = vpop.xlane.xlu0 %1073
    %v1075 = vsub.f32 %v1069, %v1074
    %v1076 = vmul.f32 %v1075, 1.442695
    %v1077 = vpow.pop %v1076
    %v1078 = vsel %vm152, %v1077, 0.0
    %1079 = vadd.xlane.f32.xlu0 %v1078
    %v1080 = vpop.xlane.xlu0 %1079
    %v1081 = vrcp.pop %v1080
    %v1082 = vmul.f32 %v1077, %v1081
    %1083 = vrot.lane.b32.xlu0 %v142, 56
    %v1084 = vpop.permute.xlu0 %1083
    %v1087 = vsel %vm152, %v1082, 0
    %1089 = vmatprep.subr.mxu0 0.0
    %1090 = vmatpush1.msra.mxu0 %v1084
    %1091 = vmatprep.subr.mxu0 0.0
    %1092 = vmatpush1.msra.mxu0 0.0
    %1093 = vmatprep.subr.mxu0 0.0
    %1094 = vmatpush1.msra.mxu0 0.0
    %1095 = vmatprep.subr.mxu0 0.0
    %1096 = vmatpush1.msra.mxu0 0.0
    %1097 = vmatprep.subr.mxu0 0.0
    %1098 = vmatpush1.msra.mxu0 0.0
    %1099 = vmatprep.subr.mxu0 0.0
    %1100 = vmatpush1.msra.mxu0 0.0
    %1101 = vmatprep.subr.mxu0 0.0
    %1102 = vmatpush1.msra.mxu0 0.0
    %1103 = vmatprep.subr.mxu0 0.0
    %1104 = vmatpush1.msra.mxu0 0.0
    %1105 = vmatprep.subr.mxu0 0.0
    %1106 = vmatpush1.msra.mxu0 0.0
    %1107 = vmatprep.subr.mxu0 0.0
    %1108 = vmatpush1.msra.mxu0 0.0
    %1109 = vmatprep.subr.mxu0 0.0
    %1110 = vmatpush1.msra.mxu0 0.0
    %1111 = vmatprep.subr.mxu0 0.0
    %1112 = vmatpush1.msra.mxu0 0.0
    %1113 = vmatprep.subr.mxu0 0.0
    %1114 = vmatpush1.msra.mxu0 0.0
    %1115 = vmatprep.subr.mxu0 0.0
    %1116 = vmatpush1.msra.mxu0 0.0
    %1117 = vmatprep.subr.mxu0 0.0
    %1118 = vmatpush1.msra.mxu0 0.0
    %1119 = vmatprep.subr.mxu0 0.0
    %1120 = vmatpush1.msra.mxu0 0.0
    %1121 = vmatprep.subr.mxu0 0.0
    %1122 = vmatpush1.msra.mxu0 0.0
    %1123 = vmatprep.subr.mxu0 0.0
    %1124 = vmatpush1.msra.mxu0 0.0
    %1125 = vmatprep.subr.mxu0 0.0
    %1126 = vmatpush1.msra.mxu0 0.0
    %1127 = vmatprep.subr.mxu0 0.0
    %1128 = vmatpush1.msra.mxu0 0.0
    %1129 = vmatprep.subr.mxu0 0.0
    %1130 = vmatpush1.msra.mxu0 0.0
    %1131 = vmatprep.subr.mxu0 0.0
    %1132 = vmatpush1.msra.mxu0 0.0
    %1133 = vmatprep.subr.mxu0 0.0
    %1134 = vmatpush1.msra.mxu0 0.0
    %1135 = vmatprep.subr.mxu0 0.0
    %1136 = vmatpush1.msra.mxu0 0.0
    %1137 = vmatprep.subr.mxu0 0.0
    %1138 = vmatpush1.msra.mxu0 0.0
    %1139 = vmatprep.subr.mxu0 0.0
    %1140 = vmatpush1.msra.mxu0 0.0
    %1141 = vmatprep.subr.mxu0 0.0
    %1142 = vmatpush1.msra.mxu0 0.0
    %1143 = vmatprep.subr.mxu0 0.0
    %1144 = vmatpush1.msra.mxu0 0.0
    %1145 = vmatprep.subr.mxu0 0.0
    %1146 = vmatpush1.msra.mxu0 0.0
    %1147 = vmatprep.subr.mxu0 0.0
    %1148 = vmatpush1.msra.mxu0 0.0
    %1149 = vmatprep.subr.mxu0 0.0
    %1150 = vmatpush1.msra.mxu0 0.0
    %1151 = vmatprep.subr.mxu0 0.0
    %1152 = vmatpush1.msra.mxu0 0.0
    %1153 = vmatprep.mubr.f32.mxu0 0.0
    %1154 = vmatmul.mubr.f32.gmra.mrb[0].mxu0 %v1087
    %v1155 = vpop.f32.mrb[0].mxu0
    %v1156 = vadd.f32 0.0, %v1155
    %v1157 = vpop.f32.mrb[0].mxu0
    %1158 = vdwg.mxu0
    %1159 = vrot.lane.b32.xlu0 %v142, 112
    %v1160 = vpop.permute.xlu0 %1159
    %1161 = vrot.lane.b32.xlu0 %v142, 80
    %v1162 = vpop.permute.xlu0 %1161
    %v1163 = vsel %vm152, %v1160, 0
    %v1165 = vsel %vm152, %v1162, 0
    %1167 = vmatprep.subr.mxu0 0.0
    %1168 = vmatpush1.xpose.msra.mxu0 %v1165
    %1169 = vmatprep.subr.mxu0 0.0
    %1170 = vmatpush1.xpose.msra.mxu0 0.0
    %1171 = vmatprep.subr.mxu0 0.0
    %1172 = vmatpush1.xpose.msra.mxu0 0.0
    %1173 = vmatprep.subr.mxu0 0.0
    %1174 = vmatpush1.xpose.msra.mxu0 0.0
    %1175 = vmatprep.subr.mxu0 0.0
    %1176 = vmatpush1.xpose.msra.mxu0 0.0
    %1177 = vmatprep.subr.mxu0 0.0
    %1178 = vmatpush1.xpose.msra.mxu0 0.0
    %1179 = vmatprep.subr.mxu0 0.0
    %1180 = vmatpush1.xpose.msra.mxu0 0.0
    %1181 = vmatprep.subr.mxu0 0.0
    %1182 = vmatpush1.xpose.msra.mxu0 0.0
    %1183 = vmatprep.subr.mxu0 0.0
    %1184 = vmatpush1.xpose.msra.mxu0 0.0
    %1185 = vmatprep.subr.mxu0 0.0
    %1186 = vmatpush1.xpose.msra.mxu0 0.0
    %1187 = vmatprep.subr.mxu0 0.0
    %1188 = vmatpush1.xpose.msra.mxu0 0.0
    %1189 = vmatprep.subr.mxu0 0.0
    %1190 = vmatpush1.xpose.msra.mxu0 0.0
    %1191 = vmatprep.subr.mxu0 0.0
    %1192 = vmatpush1.xpose.msra.mxu0 0.0
    %1193 = vmatprep.subr.mxu0 0.0
    %1194 = vmatpush1.xpose.msra.mxu0 0.0
    %1195 = vmatprep.subr.mxu0 0.0
    %1196 = vmatpush1.xpose.msra.mxu0 0.0
    %1197 = vmatprep.subr.mxu0 0.0
    %1198 = vmatpush1.xpose.msra.mxu0 0.0
    %1199 = vmatprep.subr.mxu0 0.0
    %1200 = vmatpush1.xpose.msra.mxu0 0.0
    %1201 = vmatprep.subr.mxu0 0.0
    %1202 = vmatpush1.xpose.msra.mxu0 0.0
    %1203 = vmatprep.subr.mxu0 0.0
    %1204 = vmatpush1.xpose.msra.mxu0 0.0
    %1205 = vmatprep.subr.mxu0 0.0
    %1206 = vmatpush1.xpose.msra.mxu0 0.0
    %1207 = vmatprep.subr.mxu0 0.0
    %1208 = vmatpush1.xpose.msra.mxu0 0.0
    %1209 = vmatprep.subr.mxu0 0.0
    %1210 = vmatpush1.xpose.msra.mxu0 0.0
    %1211 = vmatprep.subr.mxu0 0.0
    %1212 = vmatpush1.xpose.msra.mxu0 0.0
    %1213 = vmatprep.subr.mxu0 0.0
    %1214 = vmatpush1.xpose.msra.mxu0 0.0
    %1215 = vmatprep.subr.mxu0 0.0
    %1216 = vmatpush1.xpose.msra.mxu0 0.0
    %1217 = vmatprep.subr.mxu0 0.0
    %1218 = vmatpush1.xpose.msra.mxu0 0.0
    %1219 = vmatprep.subr.mxu0 0.0
    %1220 = vmatpush1.xpose.msra.mxu0 0.0
    %1221 = vmatprep.subr.mxu0 0.0
    %1222 = vmatpush1.xpose.msra.mxu0 0.0
    %1223 = vmatprep.subr.mxu0 0.0
    %1224 = vmatpush1.xpose.msra.mxu0 0.0
    %1225 = vmatprep.subr.mxu0 0.0
    %1226 = vmatpush1.xpose.msra.mxu0 0.0
    %1227 = vmatprep.subr.mxu0 0.0
    %1228 = vmatpush1.xpose.msra.mxu0 0.0
    %1229 = vmatprep.subr.mxu0 0.0
    %1230 = vmatpush1.xpose.msra.mxu0 0.0
    %1231 = vmatprep.mubr.f32.mxu0 0.0
    %1232 = vmatmul.mubr.f32.gmra.mrb[0].mxu0 %v1163
    %v1233 = vpop.f32.mrb[0].mxu0
    %v1234 = vadd.f32 %v829, %v1233
    %v1235 = vpop.f32.mrb[0].mxu0
    %1236 = vdwg.mxu0
    %v1237 = vsel %vm152, %v1234, -inf
    %1238 = vmax.xlane.f32.xlu0 %v1237
    %v1239 = vpop.xlane.xlu0 %1238
    %v1240 = vsub.f32 %v1234, %v1239
    %v1241 = vmul.f32 %v1240, 1.442695
    %v1242 = vpow.pop %v1241
    %v1243 = vsel %vm152, %v1242, 0.0
    %1244 = vadd.xlane.f32.xlu0 %v1243
    %v1245 = vpop.xlane.xlu0 %1244
    %v1246 = vrcp.pop %v1245
    %v1247 = vmul.f32 %v1242, %v1246
    %1248 = vrot.lane.b32.xlu0 %v142, 48
    %v1249 = vpop.permute.xlu0 %1248
    %v1252 = vsel %vm152, %v1247, 0
    %1254 = vmatprep.subr.mxu0 0.0
    %1255 = vmatpush1.msra.mxu0 %v1249
    %1256 = vmatprep.subr.mxu0 0.0
    %1257 = vmatpush1.msra.mxu0 0.0
    %1258 = vmatprep.subr.mxu0 0.0
    %1259 = vmatpush1.msra.mxu0 0.0
    %1260 = vmatprep.subr.mxu0 0.0
    %1261 = vmatpush1.msra.mxu0 0.0
    %1262 = vmatprep.subr.mxu0 0.0
    %1263 = vmatpush1.msra.mxu0 0.0
    %1264 = vmatprep.subr.mxu0 0.0
    %1265 = vmatpush1.msra.mxu0 0.0
    %1266 = vmatprep.subr.mxu0 0.0
    %1267 = vmatpush1.msra.mxu0 0.0
    %1268 = vmatprep.subr.mxu0 0.0
    %1269 = vmatpush1.msra.mxu0 0.0
    %1270 = vmatprep.subr.mxu0 0.0
    %1271 = vmatpush1.msra.mxu0 0.0
    %1272 = vmatprep.subr.mxu0 0.0
    %1273 = vmatpush1.msra.mxu0 0.0
    %1274 = vmatprep.subr.mxu0 0.0
    %1275 = vmatpush1.msra.mxu0 0.0
    %1276 = vmatprep.subr.mxu0 0.0
    %1277 = vmatpush1.msra.mxu0 0.0
    %1278 = vmatprep.subr.mxu0 0.0
    %1279 = vmatpush1.msra.mxu0 0.0
    %1280 = vmatprep.subr.mxu0 0.0
    %1281 = vmatpush1.msra.mxu0 0.0
    %1282 = vmatprep.subr.mxu0 0.0
    %1283 = vmatpush1.msra.mxu0 0.0
    %1284 = vmatprep.subr.mxu0 0.0
    %1285 = vmatpush1.msra.mxu0 0.0
    %1286 = vmatprep.subr.mxu0 0.0
    %1287 = vmatpush1.msra.mxu0 0.0
    %1288 = vmatprep.subr.mxu0 0.0
    %1289 = vmatpush1.msra.mxu0 0.0
    %1290 = vmatprep.subr.mxu0 0.0
    %1291 = vmatpush1.msra.mxu0 0.0
    %1292 = vmatprep.subr.mxu0 0.0
    %1293 = vmatpush1.msra.mxu0 0.0
    %1294 = vmatprep.subr.mxu0 0.0
    %1295 = vmatpush1.msra.mxu0 0.0
    %1296 = vmatprep.subr.mxu0 0.0
    %1297 = vmatpush1.msra.mxu0 0.0
    %1298 = vmatprep.subr.mxu0 0.0
    %1299 = vmatpush1.msra.mxu0 0.0
    %1300 = vmatprep.subr.mxu0 0.0
    %1301 = vmatpush1.msra.mxu0 0.0
    %1302 = vmatprep.subr.mxu0 0.0
    %1303 = vmatpush1.msra.mxu0 0.0
    %1304 = vmatprep.subr.mxu0 0.0
    %1305 = vmatpush1.msra.mxu0 0.0
    %1306 = vmatprep.subr.mxu0 0.0
    %1307 = vmatpush1.msra.mxu0 0.0
    %1308 = vmatprep.subr.mxu0 0.0
    %1309 = vmatpush1.msra.mxu0 0.0
    %1310 = vmatprep.subr.mxu0 0.0
    %1311 = vmatpush1.msra.mxu0 0.0
    %1312 = vmatprep.subr.mxu0 0.0
    %1313 = vmatpush1.msra.mxu0 0.0
    %1314 = vmatprep.subr.mxu0 0.0
    %1315 = vmatpush1.msra.mxu0 0.0
    %1316 = vmatprep.subr.mxu0 0.0
    %1317 = vmatpush1.msra.mxu0 0.0
    %1318 = vmatprep.mubr.f32.mxu0 0.0
    %1319 = vmatmul.mubr.f32.gmra.mrb[0].mxu0 %v1252
    %v1320 = vpop.f32.mrb[0].mxu0
    %v1321 = vadd.f32 0.0, %v1320
    %v1322 = vpop.f32.mrb[0].mxu0
    %1323 = vdwg.mxu0
    %1324 = vrot.lane.b32.xlu0 %v142, 104
    %v1325 = vpop.permute.xlu0 %1324
    %1326 = vrot.lane.b32.xlu0 %v142, 72
    %v1327 = vpop.permute.xlu0 %1326
    %v1328 = vsel %vm152, %v1325, 0
    %v1330 = vsel %vm152, %v1327, 0
    %1332 = vmatprep.subr.mxu0 0.0
    %1333 = vmatpush1.xpose.msra.mxu0 %v1330
    %1334 = vmatprep.subr.mxu0 0.0
    %1335 = vmatpush1.xpose.msra.mxu0 0.0
    %1336 = vmatprep.subr.mxu0 0.0
    %1337 = vmatpush1.xpose.msra.mxu0 0.0
    %1338 = vmatprep.subr.mxu0 0.0
    %1339 = vmatpush1.xpose.msra.mxu0 0.0
    %1340 = vmatprep.subr.mxu0 0.0
    %1341 = vmatpush1.xpose.msra.mxu0 0.0
    %1342 = vmatprep.subr.mxu0 0.0
    %1343 = vmatpush1.xpose.msra.mxu0 0.0
    %1344 = vmatprep.subr.mxu0 0.0
    %1345 = vmatpush1.xpose.msra.mxu0 0.0
    %1346 = vmatprep.subr.mxu0 0.0
    %1347 = vmatpush1.xpose.msra.mxu0 0.0
    %1348 = vmatprep.subr.mxu0 0.0
    %1349 = vmatpush1.xpose.msra.mxu0 0.0
    %1350 = vmatprep.subr.mxu0 0.0
    %1351 = vmatpush1.xpose.msra.mxu0 0.0
    %1352 = vmatprep.subr.mxu0 0.0
    %1353 = vmatpush1.xpose.msra.mxu0 0.0
    %1354 = vmatprep.subr.mxu0 0.0
    %1355 = vmatpush1.xpose.msra.mxu0 0.0
    %1356 = vmatprep.subr.mxu0 0.0
    %1357 = vmatpush1.xpose.msra.mxu0 0.0
    %1358 = vmatprep.subr.mxu0 0.0
    %1359 = vmatpush1.xpose.msra.mxu0 0.0
    %1360 = vmatprep.subr.mxu0 0.0
    %1361 = vmatpush1.xpose.msra.mxu0 0.0
    %1362 = vmatprep.subr.mxu0 0.0
    %1363 = vmatpush1.xpose.msra.mxu0 0.0
    %1364 = vmatprep.subr.mxu0 0.0
    %1365 = vmatpush1.xpose.msra.mxu0 0.0
    %1366 = vmatprep.subr.mxu0 0.0
    %1367 = vmatpush1.xpose.msra.mxu0 0.0
    %1368 = vmatprep.subr.mxu0 0.0
    %1369 = vmatpush1.xpose.msra.mxu0 0.0
    %1370 = vmatprep.subr.mxu0 0.0
    %1371 = vmatpush1.xpose.msra.mxu0 0.0
    %1372 = vmatprep.subr.mxu0 0.0
    %1373 = vmatpush1.xpose.msra.mxu0 0.0
    %1374 = vmatprep.subr.mxu0 0.0
    %1375 = vmatpush1.xpose.msra.mxu0 0.0
    %1376 = vmatprep.subr.mxu0 0.0
    %1377 = vmatpush1.xpose.msra.mxu0 0.0
    %1378 = vmatprep.subr.mxu0 0.0
    %1379 = vmatpush1.xpose.msra.mxu0 0.0
    %1380 = vmatprep.subr.mxu0 0.0
    %1381 = vmatpush1.xpose.msra.mxu0 0.0
    %1382 = vmatprep.subr.mxu0 0.0
    %1383 = vmatpush1.xpose.msra.mxu0 0.0
    %1384 = vmatprep.subr.mxu0 0.0
    %1385 = vmatpush1.xpose.msra.mxu0 0.0
    %1386 = vmatprep.subr.mxu0 0.0
    %1387 = vmatpush1.xpose.msra.mxu0 0.0
    %1388 = vmatprep.subr.mxu0 0.0
    %1389 = vmatpush1.xpose.msra.mxu0 0.0
    %1390 = vmatprep.subr.mxu0 0.0
    %1391 = vmatpush1.xpose.msra.mxu0 0.0
    %1392 = vmatprep.subr.mxu0 0.0
    %1393 = vmatpush1.xpose.msra.mxu0 0.0
    %1394 = vmatprep.subr.mxu0 0.0
    %1395 = vmatpush1.xpose.msra.mxu0 0.0
    %1396 = vmatprep.mubr.f32.mxu0 0.0
    %1397 = vmatmul.mubr.f32.gmra.mrb[0].mxu0 %v1328
    %v1398 = vpop.f32.mrb[0].mxu0
    %v1399 = vadd.f32 %v829, %v1398
    %v1400 = vpop.f32.mrb[0].mxu0
    %1401 = vdwg.mxu0
    %v1402 = vsel %vm152, %v1399, -inf
    %1403 = vmax.xlane.f32.xlu0 %v1402
    %v1404 = vpop.xlane.xlu0 %1403
    %v1405 = vsub.f32 %v1399, %v1404
    %v1406 = vmul.f32 %v1405, 1.442695
    %v1407 = vpow.pop %v1406
    %v1408 = vsel %vm152, %v1407, 0.0
    %1409 = vadd.xlane.f32.xlu0 %v1408
    %v1410 = vpop.xlane.xlu0 %1409
    %v1411 = vrcp.pop %v1410
    %v1412 = vmul.f32 %v1407, %v1411
    %1413 = vrot.lane.b32.xlu0 %v142, 40
    %v1414 = vpop.permute.xlu0 %1413
    %v1417 = vsel %vm152, %v1412, 0
    %1419 = vmatprep.subr.mxu0 0.0
    %1420 = vmatpush1.msra.mxu0 %v1414
    %1421 = vmatprep.subr.mxu0 0.0
    %1422 = vmatpush1.msra.mxu0 0.0
    %1423 = vmatprep.subr.mxu0 0.0
    %1424 = vmatpush1.msra.mxu0 0.0
    %1425 = vmatprep.subr.mxu0 0.0
    %1426 = vmatpush1.msra.mxu0 0.0
    %1427 = vmatprep.subr.mxu0 0.0
    %1428 = vmatpush1.msra.mxu0 0.0
    %1429 = vmatprep.subr.mxu0 0.0
    %1430 = vmatpush1.msra.mxu0 0.0
    %1431 = vmatprep.subr.mxu0 0.0
    %1432 = vmatpush1.msra.mxu0 0.0
    %1433 = vmatprep.subr.mxu0 0.0
    %1434 = vmatpush1.msra.mxu0 0.0
    %1435 = vmatprep.subr.mxu0 0.0
    %1436 = vmatpush1.msra.mxu0 0.0
    %1437 = vmatprep.subr.mxu0 0.0
    %1438 = vmatpush1.msra.mxu0 0.0
    %1439 = vmatprep.subr.mxu0 0.0
    %1440 = vmatpush1.msra.mxu0 0.0
    %1441 = vmatprep.subr.mxu0 0.0
    %1442 = vmatpush1.msra.mxu0 0.0
    %1443 = vmatprep.subr.mxu0 0.0
    %1444 = vmatpush1.msra.mxu0 0.0
    %1445 = vmatprep.subr.mxu0 0.0
    %1446 = vmatpush1.msra.mxu0 0.0
    %1447 = vmatprep.subr.mxu0 0.0
    %1448 = vmatpush1.msra.mxu0 0.0
    %1449 = vmatprep.subr.mxu0 0.0
    %1450 = vmatpush1.msra.mxu0 0.0
    %1451 = vmatprep.subr.mxu0 0.0
    %1452 = vmatpush1.msra.mxu0 0.0
    %1453 = vmatprep.subr.mxu0 0.0
    %1454 = vmatpush1.msra.mxu0 0.0
    %1455 = vmatprep.subr.mxu0 0.0
    %1456 = vmatpush1.msra.mxu0 0.0
    %1457 = vmatprep.subr.mxu0 0.0
    %1458 = vmatpush1.msra.mxu0 0.0
    %1459 = vmatprep.subr.mxu0 0.0
    %1460 = vmatpush1.msra.mxu0 0.0
    %1461 = vmatprep.subr.mxu0 0.0
    %1462 = vmatpush1.msra.mxu0 0.0
    %1463 = vmatprep.subr.mxu0 0.0
    %1464 = vmatpush1.msra.mxu0 0.0
    %1465 = vmatprep.subr.mxu0 0.0
    %1466 = vmatpush1.msra.mxu0 0.0
    %1467 = vmatprep.subr.mxu0 0.0
    %1468 = vmatpush1.msra.mxu0 0.0
    %1469 = vmatprep.subr.mxu0 0.0
    %1470 = vmatpush1.msra.mxu0 0.0
    %1471 = vmatprep.subr.mxu0 0.0
    %1472 = vmatpush1.msra.mxu0 0.0
    %1473 = vmatprep.subr.mxu0 0.0
    %1474 = vmatpush1.msra.mxu0 0.0
    %1475 = vmatprep.subr.mxu0 0.0
    %1476 = vmatpush1.msra.mxu0 0.0
    %1477 = vmatprep.subr.mxu0 0.0
    %1478 = vmatpush1.msra.mxu0 0.0
    %1479 = vmatprep.subr.mxu0 0.0
    %1480 = vmatpush1.msra.mxu0 0.0
    %1481 = vmatprep.subr.mxu0 0.0
    %1482 = vmatpush1.msra.mxu0 0.0
    %1483 = vmatprep.mubr.f32.mxu0 0.0
    %1484 = vmatmul.mubr.f32.gmra.mrb[0].mxu0 %v1417
    %v1485 = vpop.f32.mrb[0].mxu0
    %v1486 = vadd.f32 0.0, %v1485
    %v1487 = vpop.f32.mrb[0].mxu0
    %1488 = vdwg.mxu0
    %1490 = vrot.lane.b32.xlu0 %v1156, 8
    %v1491 = vpop.permute.xlu0 %1490
    %1494 = vrot.lane.b32.xlu0 %v1321, 16
    %v1495 = vpop.permute.xlu0 %1494
    %1498 = vrot.lane.b32.xlu0 %v1486, 24
    %v1499 = vpop.permute.xlu0 %1498
    %v1501 = vsel %vm152, %v991, %v1491
    %v1502 = vsel %vm822, %v1501, %v1495
    %v1503 = vsel %vm824, %v1502, %v1499
    %v1504 = vld [vmem:[%s4] sm:$0xff]
    %v1505 = vld [vmem:[%s4 + $0x8] sm:$0xff]
    %v1506 = vld [vmem:[%s4 + $0x10] sm:$0xff]
    %v1507 = vld [vmem:[%s4 + $0x18] sm:$0xff]
    %v1508 = vld [vmem:[%s5] sm:$0x1]
    %v1510 = vlaneseq
    %v1511 = vshrl.u32 %v1510, 7
    %v1512 = vsub.s32 0, %v1511
    %v1513 = vrot.slane %v1508, %v1512
    %v1516 = vsel %vm63, %v825, 0
    %v1519 = vsel %vm63, %v1503, 0
    %1521 = vmatprep.subr.mxu0 0.0
    %1522 = vmatpush1.msra.mxu0 %v1504
    %1523 = vmatprep.subr.mxu0 0.0
    %1524 = vmatpush1.msra.mxu0 %v1505
    %1525 = vmatprep.subr.mxu0 0.0
    %1526 = vmatpush1.msra.mxu0 %v1506
    %1527 = vmatprep.subr.mxu0 0.0
    %1528 = vmatpush1.msra.mxu0 %v1507
    %1529 = vmatprep.subr.mxu0 0.0
    %1530 = vmatpush1.msra.mxu0 0.0
    %1531 = vmatprep.subr.mxu0 0.0
    %1532 = vmatpush1.msra.mxu0 0.0
    %1533 = vmatprep.subr.mxu0 0.0
    %1534 = vmatpush1.msra.mxu0 0.0
    %1535 = vmatprep.subr.mxu0 0.0
    %1536 = vmatpush1.msra.mxu0 0.0
    %1537 = vmatprep.subr.mxu0 0.0
    %1538 = vmatpush1.msra.mxu0 0.0
    %1539 = vmatprep.subr.mxu0 0.0
    %1540 = vmatpush1.msra.mxu0 0.0
    %1541 = vmatprep.subr.mxu0 0.0
    %1542 = vmatpush1.msra.mxu0 0.0
    %1543 = vmatprep.subr.mxu0 0.0
    %1544 = vmatpush1.msra.mxu0 0.0
    %1545 = vmatprep.subr.mxu0 0.0
    %1546 = vmatpush1.msra.mxu0 0.0
    %1547 = vmatprep.subr.mxu0 0.0
    %1548 = vmatpush1.msra.mxu0 0.0
    %1549 = vmatprep.subr.mxu0 0.0
    %1550 = vmatpush1.msra.mxu0 0.0
    %1551 = vmatprep.subr.mxu0 0.0
    %1552 = vmatpush1.msra.mxu0 0.0
    %1553 = vmatprep.subr.mxu0 0.0
    %1554 = vmatpush1.msra.mxu0 0.0
    %1555 = vmatprep.subr.mxu0 0.0
    %1556 = vmatpush1.msra.mxu0 0.0
    %1557 = vmatprep.subr.mxu0 0.0
    %1558 = vmatpush1.msra.mxu0 0.0
    %1559 = vmatprep.subr.mxu0 0.0
    %1560 = vmatpush1.msra.mxu0 0.0
    %1561 = vmatprep.subr.mxu0 0.0
    %1562 = vmatpush1.msra.mxu0 0.0
    %1563 = vmatprep.subr.mxu0 0.0
    %1564 = vmatpush1.msra.mxu0 0.0
    %1565 = vmatprep.subr.mxu0 0.0
    %1566 = vmatpush1.msra.mxu0 0.0
    %1567 = vmatprep.subr.mxu0 0.0
    %1568 = vmatpush1.msra.mxu0 0.0
    %1569 = vmatprep.subr.mxu0 0.0
    %1570 = vmatpush1.msra.mxu0 0.0
    %1571 = vmatprep.subr.mxu0 0.0
    %1572 = vmatpush1.msra.mxu0 0.0
    %1573 = vmatprep.subr.mxu0 0.0
    %1574 = vmatpush1.msra.mxu0 0.0
    %1575 = vmatprep.subr.mxu0 0.0
    %1576 = vmatpush1.msra.mxu0 0.0
    %1577 = vmatprep.subr.mxu0 0.0
    %1578 = vmatpush1.msra.mxu0 0.0
    %1579 = vmatprep.subr.mxu0 0.0
    %1580 = vmatpush1.msra.mxu0 0.0
    %1581 = vmatprep.subr.mxu0 0.0
    %1582 = vmatpush1.msra.mxu0 0.0
    %1583 = vmatprep.subr.mxu0 0.0
    %1584 = vmatpush1.msra.mxu0 0.0
    %1585 = vmatprep.mubr.f32.mxu0 0.0
    %1586 = vmatmul.mubr.f32.gmra.mrb[0].mxu0 %v1516
    %v1587 = vpop.f32.mrb[0].mxu0
    %v1588 = vadd.f32 %v1513, %v1587
    %v1589 = vpop.f32.mrb[0].mxu0
    %1590 = vmatprep.mubr.f32.mxu0 0.0
    %1591 = vmatmul.mubr.f32.gmra.mrb[0].mxu0 %v1519
    %v1592 = vpop.f32.mrb[0].mxu0
    %v1593 = vadd.f32 %v1513, %v1592
    %v1594 = vpop.f32.mrb[0].mxu0
    %1595 = vdwg.mxu0
    %v1596 = vadd.f32 %v48, %v1588
    %v1597 = vadd.f32 %v49, %v1593
    %v1598 = vld [vmem:[%s10] sm:$0x1]
    %v1599 = vld [vmem:[%s11] sm:$0x1]
    %v1600 = vsel %vm63, %v1596, 0.0
    %1601 = vadd.xlane.f32.xlu0 %v1600
    %v1602 = vpop.xlane.xlu0 %1601
    %v1603 = vsel %vm63, %v1597, 0.0
    %1604 = vadd.xlane.f32.xlu0 %v1603
    %v1605 = vpop.xlane.xlu0 %1604
    %v1606 = vrcp.pop 32.0
    %v1607 = vmul.f32 %v1602, %v1606
    %v1608 = vmul.f32 %v1605, %v1606
    %v1609 = vsub.f32 %v1596, %v1607
    %v1610 = vsub.f32 %v1597, %v1608
    %v1611 = vmul.f32 %v1609, %v1609
    %v1612 = vmul.f32 %v1610, %v1610
    %v1613 = vsel %vm63, %v1611, 0.0
    %1614 = vadd.xlane.f32.xlu0 %v1613
    %v1615 = vpop.xlane.xlu0 %1614
    %v1616 = vsel %vm63, %v1612, 0.0
    %1617 = vadd.xlane.f32.xlu0 %v1616
    %v1618 = vpop.xlane.xlu0 %1617
    %v1619 = vmul.f32 %v1615, 0.032258064
    %v1620 = vmul.f32 %v1618, 0.032258064
    %v1621 = vrsqrt.pop %v1619
    %v1622 = vmul.f32 %v1619, %v1621
    %vm1623 = vcmp.eq.f32.partialorder %v1619, inf
    %v1624 = vsel %vm1623, %v1619, %v1622
    %vm1625 = vcmp.eq.f32.partialorder %v1619, 0.0
    %v1626 = vand.u32 %v1619, 2147483648
    %v1627 = vsel %vm1625, %v1626, %v1624
    %v1628 = vrsqrt.pop %v1620
    %v1629 = vmul.f32 %v1620, %v1628
    %vm1630 = vcmp.eq.f32.partialorder %v1620, inf
    %v1631 = vsel %vm1630, %v1620, %v1629
    %vm1632 = vcmp.eq.f32.partialorder %v1620, 0.0
    %v1633 = vand.u32 %v1620, 2147483648
    %v1634 = vsel %vm1632, %v1633, %v1631
    %v1635 = vadd.f32 %v1627, 1e-06
    %v1636 = vadd.f32 %v1634, 1e-06
    %v1637 = vrcp.pop %v1635
    %v1638 = vmul.f32 1.0, %v1637
    %v1639 = vrcp.pop %v1636
    %v1640 = vmul.f32 1.0, %v1639
    %v1642 = vlaneseq
    %v1643 = vshrl.u32 %v1642, 7
    %v1644 = vsub.s32 0, %v1643
    %v1645 = vrot.slane %v1598, %v1644
    %v1647 = vmul.f32 %v1645, %v1609
    %v1648 = vmul.f32 %v1645, %v1610
    %v1649 = vmul.f32 %v1647, %v1638
    %v1650 = vmul.f32 %v1648, %v1640
    %v1652 = vlaneseq
    %v1653 = vshrl.u32 %v1652, 7
    %v1654 = vsub.s32 0, %v1653
    %v1655 = vrot.slane %v1599, %v1654
    %v1657 = vadd.f32 %v1649, %v1655
    %v1658 = vadd.f32 %v1650, %v1655
    %v1659 = vld [vmem:[%s6] sm:$0xff]
    %v1660 = vld [vmem:[%s6 + $0x8] sm:$0xff]
    %v1661 = vld [vmem:[%s6 + $0x10] sm:$0xff]
    %v1662 = vld [vmem:[%s6 + $0x18] sm:$0xff]
    %v1663 = vld [vmem:[%s7] sm:$0x1]
    %v1665 = vlaneseq
    %v1666 = vshrl.u32 %v1665, 7
    %v1667 = vsub.s32 0, %v1666
    %v1668 = vrot.slane %v1663, %v1667
    %v1671 = vsel %vm63, %v1657, 0
    %v1674 = vsel %vm63, %v1658, 0
    %1676 = vmatprep.subr.mxu0 0.0
    %1677 = vmatpush1.msra.mxu0 %v1659
    %1678 = vmatprep.subr.mxu0 0.0
    %1679 = vmatpush1.msra.mxu0 %v1660
    %1680 = vmatprep.subr.mxu0 0.0
    %1681 = vmatpush1.msra.mxu0 %v1661
    %1682 = vmatprep.subr.mxu0 0.0
    %1683 = vmatpush1.msra.mxu0 %v1662
    %1684 = vmatprep.subr.mxu0 0.0
    %1685 = vmatpush1.msra.mxu0 0.0
    %1686 = vmatprep.subr.mxu0 0.0
    %1687 = vmatpush1.msra.mxu0 0.0
    %1688 = vmatprep.subr.mxu0 0.0
    %1689 = vmatpush1.msra.mxu0 0.0
    %1690 = vmatprep.subr.mxu0 0.0
    %1691 = vmatpush1.msra.mxu0 0.0
    %1692 = vmatprep.subr.mxu0 0.0
    %1693 = vmatpush1.msra.mxu0 0.0
    %1694 = vmatprep.subr.mxu0 0.0
    %1695 = vmatpush1.msra.mxu0 0.0
    %1696 = vmatprep.subr.mxu0 0.0
    %1697 = vmatpush1.msra.mxu0 0.0
    %1698 = vmatprep.subr.mxu0 0.0
    %1699 = vmatpush1.msra.mxu0 0.0
    %1700 = vmatprep.subr.mxu0 0.0
    %1701 = vmatpush1.msra.mxu0 0.0
    %1702 = vmatprep.subr.mxu0 0.0
    %1703 = vmatpush1.msra.mxu0 0.0
    %1704 = vmatprep.subr.mxu0 0.0
    %1705 = vmatpush1.msra.mxu0 0.0
    %1706 = vmatprep.subr.mxu0 0.0
    %1707 = vmatpush1.msra.mxu0 0.0
    %1708 = vmatprep.subr.mxu0 0.0
    %1709 = vmatpush1.msra.mxu0 0.0
    %1710 = vmatprep.subr.mxu0 0.0
    %1711 = vmatpush1.msra.mxu0 0.0
    %1712 = vmatprep.subr.mxu0 0.0
    %1713 = vmatpush1.msra.mxu0 0.0
    %1714 = vmatprep.subr.mxu0 0.0
    %1715 = vmatpush1.msra.mxu0 0.0
    %1716 = vmatprep.subr.mxu0 0.0
    %1717 = vmatpush1.msra.mxu0 0.0
    %1718 = vmatprep.subr.mxu0 0.0
    %1719 = vmatpush1.msra.mxu0 0.0
    %1720 = vmatprep.subr.mxu0 0.0
    %1721 = vmatpush1.msra.mxu0 0.0
    %1722 = vmatprep.subr.mxu0 0.0
    %1723 = vmatpush1.msra.mxu0 0.0
    %1724 = vmatprep.subr.mxu0 0.0
    %1725 = vmatpush1.msra.mxu0 0.0
    %1726 = vmatprep.subr.mxu0 0.0
    %1727 = vmatpush1.msra.mxu0 0.0
    %1728 = vmatprep.subr.mxu0 0.0
    %1729 = vmatpush1.msra.mxu0 0.0
    %1730 = vmatprep.subr.mxu0 0.0
    %1731 = vmatpush1.msra.mxu0 0.0
    %1732 = vmatprep.subr.mxu0 0.0
    %1733 = vmatpush1.msra.mxu0 0.0
    %1734 = vmatprep.subr.mxu0 0.0
    %1735 = vmatpush1.msra.mxu0 0.0
    %1736 = vmatprep.subr.mxu0 0.0
    %1737 = vmatpush1.msra.mxu0 0.0
    %1738 = vmatprep.subr.mxu0 0.0
    %1739 = vmatpush1.msra.mxu0 0.0
    %1740 = vmatprep.mubr.f32.mxu0 0.0
    %1741 = vmatmul.mubr.f32.gmra.mrb[0].mxu0 %v1671
    %v1742 = vpop.f32.mrb[0].mxu0
    %v1743 = vadd.f32 %v1668, %v1742
    %v1744 = vpop.f32.mrb[0].mxu0
    %1745 = vmatprep.mubr.f32.mxu0 0.0
    %1746 = vmatmul.mubr.f32.gmra.mrb[0].mxu0 %v1674
    %v1747 = vpop.f32.mrb[0].mxu0
    %v1748 = vadd.f32 %v1668, %v1747
    %v1749 = vpop.f32.mrb[0].mxu0
    %1750 = vdwg.mxu0
    %v1751 = vmax.f32 %v1743, 0.0
    %v1752 = vmax.f32 %v1748, 0.0
    %v1753 = vld [vmem:[%s8] sm:$0xff]
    %v1754 = vld [vmem:[%s8 + $0x8] sm:$0xff]
    %v1755 = vld [vmem:[%s8 + $0x10] sm:$0xff]
    %v1756 = vld [vmem:[%s8 + $0x18] sm:$0xff]
    %v1757 = vld [vmem:[%s8 + $0x20] sm:$0xff]
    %v1758 = vld [vmem:[%s8 + $0x28] sm:$0xff]
    %v1759 = vld [vmem:[%s8 + $0x30] sm:$0xff]
    %v1760 = vld [vmem:[%s8 + $0x38] sm:$0xff]
    %v1761 = vld [vmem:[%s8 + $0x40] sm:$0xff]
    %v1762 = vld [vmem:[%s8 + $0x48] sm:$0xff]
    %v1763 = vld [vmem:[%s8 + $0x50] sm:$0xff]
    %v1764 = vld [vmem:[%s8 + $0x58] sm:$0xff]
    %v1765 = vld [vmem:[%s8 + $0x60] sm:$0xff]
    %v1766 = vld [vmem:[%s8 + $0x68] sm:$0xff]
    %v1767 = vld [vmem:[%s8 + $0x70] sm:$0xff]
    %v1768 = vld [vmem:[%s8 + $0x78] sm:$0xff]
    %v1769 = vld [vmem:[%s9] sm:$0x1]
    %v1771 = vlaneseq
    %v1772 = vshrl.u32 %v1771, 7
    %v1773 = vsub.s32 0, %v1772
    %v1774 = vrot.slane %v1769, %v1773
    %1776 = vmatprep.subr.mxu0 0.0
    %1777 = vmatpush1.msra.mxu0 %v1753
    %1778 = vmatprep.subr.mxu0 0.0
    %1779 = vmatpush1.msra.mxu0 %v1754
    %1780 = vmatprep.subr.mxu0 0.0
    %1781 = vmatpush1.msra.mxu0 %v1755
    %1782 = vmatprep.subr.mxu0 0.0
    %1783 = vmatpush1.msra.mxu0 %v1756
    %1784 = vmatprep.subr.mxu0 0.0
    %1785 = vmatpush1.msra.mxu0 %v1757
    %1786 = vmatprep.subr.mxu0 0.0
    %1787 = vmatpush1.msra.mxu0 %v1758
    %1788 = vmatprep.subr.mxu0 0.0
    %1789 = vmatpush1.msra.mxu0 %v1759
    %1790 = vmatprep.subr.mxu0 0.0
    %1791 = vmatpush1.msra.mxu0 %v1760
    %1792 = vmatprep.subr.mxu0 0.0
    %1793 = vmatpush1.msra.mxu0 %v1761
    %1794 = vmatprep.subr.mxu0 0.0
    %1795 = vmatpush1.msra.mxu0 %v1762
    %1796 = vmatprep.subr.mxu0 0.0
    %1797 = vmatpush1.msra.mxu0 %v1763
    %1798 = vmatprep.subr.mxu0 0.0
    %1799 = vmatpush1.msra.mxu0 %v1764
    %1800 = vmatprep.subr.mxu0 0.0
    %1801 = vmatpush1.msra.mxu0 %v1765
    %1802 = vmatprep.subr.mxu0 0.0
    %1803 = vmatpush1.msra.mxu0 %v1766
    %1804 = vmatprep.subr.mxu0 0.0
    %1805 = vmatpush1.msra.mxu0 %v1767
    %1806 = vmatprep.subr.mxu0 0.0
    %1807 = vmatpush1.msra.mxu0 %v1768
    %1808 = vmatprep.subr.mxu0 0.0
    %1809 = vmatpush1.msra.mxu0 0.0
    %1810 = vmatprep.subr.mxu0 0.0
    %1811 = vmatpush1.msra.mxu0 0.0
    %1812 = vmatprep.subr.mxu0 0.0
    %1813 = vmatpush1.msra.mxu0 0.0
    %1814 = vmatprep.subr.mxu0 0.0
    %1815 = vmatpush1.msra.mxu0 0.0
    %1816 = vmatprep.subr.mxu0 0.0
    %1817 = vmatpush1.msra.mxu0 0.0
    %1818 = vmatprep.subr.mxu0 0.0
    %1819 = vmatpush1.msra.mxu0 0.0
    %1820 = vmatprep.subr.mxu0 0.0
    %1821 = vmatpush1.msra.mxu0 0.0
    %1822 = vmatprep.subr.mxu0 0.0
    %1823 = vmatpush1.msra.mxu0 0.0
    %1824 = vmatprep.subr.mxu0 0.0
    %1825 = vmatpush1.msra.mxu0 0.0
    %1826 = vmatprep.subr.mxu0 0.0
    %1827 = vmatpush1.msra.mxu0 0.0
    %1828 = vmatprep.subr.mxu0 0.0
    %1829 = vmatpush1.msra.mxu0 0.0
    %1830 = vmatprep.subr.mxu0 0.0
    %1831 = vmatpush1.msra.mxu0 0.0
    %1832 = vmatprep.subr.mxu0 0.0
    %1833 = vmatpush1.msra.mxu0 0.0
    %1834 = vmatprep.subr.mxu0 0.0
    %1835 = vmatpush1.msra.mxu0 0.0
    %1836 = vmatprep.subr.mxu0 0.0
    %1837 = vmatpush1.msra.mxu0 0.0
    %1838 = vmatprep.subr.mxu0 0.0
    %1839 = vmatpush1.msra.mxu0 0.0
    %1840 = vmatprep.mubr.f32.mxu0 0.0
    %1841 = vmatmul.mubr.f32.gmra.mrb[0].mxu0 %v1751
    %v1842 = vpop.f32.mrb[0].mxu0
    %v1843 = vadd.f32 %v1774, %v1842
    %v1844 = vpop.f32.mrb[0].mxu0
    %1845 = vmatprep.mubr.f32.mxu0 0.0
    %1846 = vmatmul.mubr.f32.gmra.mrb[0].mxu0 %v1752
    %v1847 = vpop.f32.mrb[0].mxu0
    %v1848 = vadd.f32 %v1774, %v1847
    %v1849 = vpop.f32.mrb[0].mxu0
    %1850 = vdwg.mxu0
    %v1851 = vadd.f32 %v1657, %v1843
    %v1852 = vadd.f32 %v1658, %v1848
    %v1853 = vld [vmem:[%s12] sm:$0x1]
    %v1854 = vld [vmem:[%s13] sm:$0x1]
    %v1855 = vsel %vm63, %v1851, 0.0
    %1856 = vadd.xlane.f32.xlu0 %v1855
    %v1857 = vpop.xlane.xlu0 %1856
    %v1858 = vsel %vm63, %v1852, 0.0
    %1859 = vadd.xlane.f32.xlu0 %v1858
    %v1860 = vpop.xlane.xlu0 %1859
    %v1861 = vmul.f32 %v1857, %v1606
    %v1862 = vmul.f32 %v1860, %v1606
    %v1863 = vsub.f32 %v1851, %v1861
    %v1864 = vsub.f32 %v1852, %v1862
    %v1865 = vmul.f32 %v1863, %v1863
    %v1866 = vmul.f32 %v1864, %v1864
    %v1867 = vsel %vm63, %v1865, 0.0
    %1868 = vadd.xlane.f32.xlu0 %v1867
    %v1869 = vpop.xlane.xlu0 %1868
    %v1870 = vsel %vm63, %v1866, 0.0
    %1871 = vadd.xlane.f32.xlu0 %v1870
    %v1872 = vpop.xlane.xlu0 %1871
    %v1873 = vmul.f32 %v1869, 0.032258064
    %v1874 = vmul.f32 %v1872, 0.032258064
    %v1875 = vrsqrt.pop %v1873
    %v1876 = vmul.f32 %v1873, %v1875
    %vm1877 = vcmp.eq.f32.partialorder %v1873, inf
    %v1878 = vsel %vm1877, %v1873, %v1876
    %vm1879 = vcmp.eq.f32.partialorder %v1873, 0.0
    %v1880 = vand.u32 %v1873, 2147483648
    %v1881 = vsel %vm1879, %v1880, %v1878
    %v1882 = vrsqrt.pop %v1874
    %v1883 = vmul.f32 %v1874, %v1882
    %vm1884 = vcmp.eq.f32.partialorder %v1874, inf
    %v1885 = vsel %vm1884, %v1874, %v1883
    %vm1886 = vcmp.eq.f32.partialorder %v1874, 0.0
    %v1887 = vand.u32 %v1874, 2147483648
    %v1888 = vsel %vm1886, %v1887, %v1885
    %v1889 = vadd.f32 %v1881, 1e-06
    %v1890 = vadd.f32 %v1888, 1e-06
    %v1891 = vrcp.pop %v1889
    %v1892 = vmul.f32 1.0, %v1891
    %v1893 = vrcp.pop %v1890
    %v1894 = vmul.f32 1.0, %v1893
    %v1896 = vlaneseq
    %v1897 = vshrl.u32 %v1896, 7
    %v1898 = vsub.s32 0, %v1897
    %v1899 = vrot.slane %v1853, %v1898
    %v1901 = vmul.f32 %v1899, %v1863
    %v1902 = vmul.f32 %v1899, %v1864
    %v1903 = vmul.f32 %v1901, %v1892
    %v1904 = vmul.f32 %v1902, %v1894
    %v1906 = vlaneseq
    %v1907 = vshrl.u32 %v1906, 7
    %v1908 = vsub.s32 0, %v1907
    %v1909 = vrot.slane %v1854, %v1908
    %v1911 = vadd.f32 %v1903, %v1909
    %v1912 = vadd.f32 %v1904, %v1909
    %1913 = vst.msk [vmem:[#allocation2] sm:$0xff] %vm63, %v1911
    %1914 = vst.msk [vmem:[#allocation2 + $0x8] sm:$0xff] %vm63, %v1912
    // Predicated region
    $region58: #{_self_attn_call.1} parent=1 // pred_check
      _
    $region59: #{_self_attn_call.1} parent=1 // pred_check_branch
      %1916 = sbr.rel (0) target = $region61
    $region60: #{_self_attn_call.1} parent=1 // pred_region
      %s1918 = ssub.s32 256, 256
      %1919 = vsyncadd [#allocation3], %s1918
      %s1920 = sshll.u32 [#allocation2], 4
      %s1921 = int_to_ptr.vmem [resolvable:$true] %s1920
      %1926 = dma.vmem_to_hbm [thread:$0]  %s1921, 256, %s14, [#allocation3], 128, 128, 8
    $region61: #{_self_attn_call.1} parent=1 // pred_fallthru
      _
    // Predicated region
    $region62: #{_self_attn_call.1} parent=1 // pred_check
      _
    $region63: #{_self_attn_call.1} parent=1 // pred_check_branch
      %1928 = sbr.rel (0) target = $region65
    $region64: #{_self_attn_call.1} parent=1 // pred_region
      %1929 = dma.done [#allocation3], 256
    $region65: #{_self_attn_call.1} parent=1 // pred_fallthru
      _
    %1930 = vsyncpa [#allocation3], 1

</llo_original>
